<compile_context>
chip_gen: v5e
topology: v5e:2x2
jax: 0.10.0
libtpu: 0.0.40
codegen_flags: <defaults>
</compile_context>

<pallas_src>
import functools

import jax
import jax.numpy as jnp
from jax import lax
from jax.experimental import pallas as pl
from jax.experimental.pallas import tpu as pltpu


# ----------------------------------------------------------------------------
# Fused Pallas kernel (all LSTM layers + FC head, single launch, no grid)
# ----------------------------------------------------------------------------
def make_fused_kernel(num_layers, T, B_pad, H):
    H4 = 4 * H

    def kernel(*refs):
        # refs: x_ref, [wihT, whhT, bias] * num_layers, fw1T, fb1, fw2row, fb2,
        #       out_ref, seq_scr, gx_scr
        x_ref = refs[0]
        pos = 1
        layers = []
        for _ in range(num_layers):
            layers.append(refs[pos:pos + 3])
            pos += 3
        fw1_ref, fb1_ref, fw2_ref, fb2_ref = refs[pos:pos + 4]
        pos += 4
        out_ref = refs[pos]
        seq_scr = refs[pos + 1]   # (T, B_pad, H)  f32, hidden seq of prev layer
        gx_scr = refs[pos + 2]    # (T, B_pad, 4H) f32, hoisted gate pre-acts

        zeros = jnp.zeros((B_pad, H), jnp.float32)
        h_last = zeros
        layer_in = x_ref[...]     # (T*B_pad, Din) bf16

        for l in range(num_layers):
            wihT_ref, whhT_ref, b_ref = layers[l]

            # Hoisted input projection for all T steps: one bf16 MXU matmul,
            # f32 accumulation.  Gate columns are pre-ordered [i, f, o, g] and
            # the i/f/o columns are pre-scaled by 0.5 in the wrapper.
            gx = jnp.dot(layer_in, wihT_ref[...],
                         preferred_element_type=jnp.float32) + b_ref[...]
            gx_scr[...] = gx.reshape(T, B_pad, H4)

            whhT = whhT_ref[...]              # (H, 4H) bf16, loaded once/layer
            write_seq = l < num_layers - 1    # only deeper layers need the seq

            def step(t, carry, whhT=whhT, write_seq=write_seq):
                h, c = carry
                # Only the recurrent matmul stays inside the serial loop.
                gates = gx_scr[t] + jnp.dot(
                    h.astype(jnp.bfloat16), whhT,
                    preferred_element_type=jnp.float32)        # (B_pad, 4H)
                # One full-vreg tanh produces all four gates:
                #   columns [0:3H] hold 0.5*preact(i,f,o) -> sigmoid via
                #   0.5*tanh(.)+0.5; columns [3H:4H] hold preact(g) -> tanh.
                tg = jnp.tanh(gates)
                sig = 0.5 * tg[:, :3 * H] + 0.5
                i_g = sig[:, 0:H]
                f_g = sig[:, H:2 * H]
                o_g = sig[:, 2 * H:3 * H]
                g_g = tg[:, 3 * H:]
                c_new = f_g * c + i_g * g_g
                h_new = o_g * jnp.tanh(c_new)
                if write_seq:
                    seq_scr[t] = h_new
                return (h_new, c_new)

            h_last, _ = lax.fori_loop(0, T, step, (zeros, zeros),
                                      unroll=min(T, 8))
            if write_seq:
                layer_in = seq_scr[...].reshape(T * B_pad, H).astype(jnp.bfloat16)
            # TODO(synk): inter-layer dropout is identity in eval mode only.

        # FC head: Linear -> LeakyReLU(0.01) -> Dropout(identity, eval) -> Linear
        z = jnp.dot(h_last, fw1_ref[...],
                    preferred_element_type=jnp.float32) + fb1_ref[...]
        z = jnp.where(z > 0, z, jnp.float32(0.01) * z)
        # Final (Hh -> 1) projection as a VPU/XLU reduction (no N=1 MXU pass).
        y = jnp.sum(z * fw2_ref[...], axis=-1, keepdims=True) + fb2_ref[...]
        # Lane-dense, unmasked store; wrapper slices [:B, 0].
        out_ref[...] = jnp.broadcast_to(y, (B_pad, 128))

    return kernel


def _vmem_limit_bytes(T, B_pad, D, H, Hh, num_layers):
    f32, bf16 = 4, 2
    scratch = T * B_pad * H * f32 + T * B_pad * 4 * H * f32
    inputs = T * B_pad * D * bf16
    for l in range(num_layers):
        din = D if l == 0 else H
        inputs += din * 4 * H * bf16 + H * 4 * H * bf16 + 4 * H * f32
    inputs += H * Hh * f32 + Hh * f32 + Hh * f32 + f32
    out = B_pad * 128 * f32
    total = scratch + 2 * inputs + 2 * out + (4 << 20)
    return int(min(64 << 20, max(16 << 20, total)))


# ----------------------------------------------------------------------------
# Wrapper
# ----------------------------------------------------------------------------
@functools.partial(jax.jit, static_argnames=("num_layers",))
def sohlstm_forward(x, params, num_layers):
    """x: (B, T, input_size) batch_first, like the PyTorch module. Eval mode."""
    B, T, D = x.shape
    H = params["lstm0"][1].shape[1]           # w_hh: (4H, H)
    Hh = params["fc"][0].shape[0]
    H4 = 4 * H
    B_pad = max(8, -(-B // 8) * 8)            # pad batch to 8 sublanes

    # time-major + sublane-padded batch: (T, B_pad, D) -> rows (t, b)
    x_tbd = jnp.transpose(x, (1, 0, 2)).astype(jnp.float32)
    x_tbd = jnp.pad(x_tbd, ((0, 0), (0, B_pad - B), (0, 0)))
    x2d = x_tbd.reshape(T * B_pad, D).astype(jnp.bfloat16)

    def reorder_scale(w):
        # nn.LSTM row blocks [i, f, g, o] -> [i, f, o, g]; pre-scale the
        # sigmoid gates (i, f, o) by 0.5 so sigmoid(x) = 0.5*tanh(0.5x)+0.5
        # becomes one full-width tanh in the kernel (exact identity).
        i, f, g, o = w[0:H], w[H:2 * H], w[2 * H:3 * H], w[3 * H:4 * H]
        return jnp.concatenate([0.5 * i, 0.5 * f, 0.5 * o, g], axis=0)

    flat_inputs = [x2d]
    in_specs = [pl.BlockSpec((T * B_pad, D), lambda: (0, 0))]

    for l in range(num_layers):
        w_ih, w_hh, b_ih, b_hh = params[f"lstm{l}"]
        din = w_ih.shape[1]
        wihT = jnp.transpose(reorder_scale(w_ih.astype(jnp.float32))
                             ).astype(jnp.bfloat16)              # (din, 4H)
        whhT = jnp.transpose(reorder_scale(w_hh.astype(jnp.float32))
                             ).astype(jnp.bfloat16)              # (H, 4H)
        bias = reorder_scale((b_ih + b_hh).astype(jnp.float32).reshape(H4, 1)
                             ).reshape(1, H4)                    # (1, 4H) f32
        flat_inputs += [wihT, whhT, bias]
        in_specs += [
            pl.BlockSpec((din, H4), lambda: (0, 0)),
            pl.BlockSpec((H, H4), lambda: (0, 0)),
            pl.BlockSpec((1, H4), lambda: (0, 0)),
        ]

    w1, b1, w2, b2 = params["fc"]
    flat_inputs += [
        jnp.transpose(w1).astype(jnp.float32),      # (H, Hh)
        b1.reshape(1, Hh).astype(jnp.float32),      # (1, Hh)
        w2.reshape(1, Hh).astype(jnp.float32),      # (1, Hh) row for reduction
        b2.reshape(1, 1).astype(jnp.float32),       # (1, 1)
    ]
    in_specs += [
        pl.BlockSpec((H, Hh), lambda: (0, 0)),
        pl.BlockSpec((1, Hh), lambda: (0, 0)),
        pl.BlockSpec((1, Hh), lambda: (0, 0)),
        pl.BlockSpec((1, 1), lambda: (0, 0)),
    ]

    kernel = make_fused_kernel(num_layers=num_layers, T=T, B_pad=B_pad, H=H)

    y = pl.pallas_call(
        kernel,
        out_shape=jax.ShapeDtypeStruct((B_pad, 128), jnp.float32),
        grid_spec=pltpu.PrefetchScalarGridSpec(
            num_scalar_prefetch=0,
            grid=(),
            in_specs=in_specs,
            out_specs=pl.BlockSpec((B_pad, 128), lambda: (0, 0)),
            scratch_shapes=[
                pltpu.VMEM((T, B_pad, H), jnp.float32),    # hidden sequence
                pltpu.VMEM((T, B_pad, H4), jnp.float32),   # hoisted gate pre-acts
            ],
        ),
        compiler_params=pltpu.CompilerParams(
            vmem_limit_bytes=_vmem_limit_bytes(T, B_pad, D, H, Hh, num_layers)),
    )(*flat_inputs)
    return y[:B, 0]                                  # squeeze(-1) -> (B,)


# ----------------------------------------------------------------------------
# Pure-JAX f32 reference (for correctness check)
# ----------------------------------------------------------------------------
def sohlstm_reference(x, params, num_layers):
    x_tbd = jnp.transpose(x, (1, 0, 2)).astype(jnp.float32)
    B = x.shape[0]
    for layer in range(num_layers):
        w_ih, w_hh, b_ih, b_hh = params[f"lstm{layer}"]
        H = w_hh.shape[1]

        def step(carry, x_t):
            h, c = carry
            gates = x_t @ w_ih.T + h @ w_hh.T + b_ih + b_hh
            i = jax.nn.sigmoid(gates[:, 0 * H:1 * H])
            f = jax.nn.sigmoid(gates[:, 1 * H:2 * H])
            g = jnp.tanh(gates[:, 2 * H:3 * H])
            o = jax.nn.sigmoid(gates[:, 3 * H:4 * H])
            c = f * c + i * g
            h = o * jnp.tanh(c)
            return (h, c), h

        init = (jnp.zeros((B, H), jnp.float32), jnp.zeros((B, H), jnp.float32))
        _, x_tbd = jax.lax.scan(step, init, x_tbd)
    h_last = x_tbd[-1]
    w1, b1, w2, b2 = params["fc"]
    z = h_last @ w1.T + b1
    z = jnp.where(z > 0, z, 0.01 * z)
    y = z @ w2.T + b2
    return y[:, 0]


# ----------------------------------------------------------------------------
# Deterministic parameter init (shapes per nn.LSTM / nn.Linear)
# ----------------------------------------------------------------------------
def init_params(key, input_size, hidden_size, num_layers):
    params = {}
    k = 1.0 / jnp.sqrt(hidden_size)
    for layer in range(num_layers):
        d_in = input_size if layer == 0 else hidden_size
        key, k1, k2, k3, k4 = jax.random.split(key, 5)
        params[f"lstm{layer}"] = (
            jax.random.uniform(k1, (4 * hidden_size, d_in), jnp.float32, -k, k),
            jax.random.uniform(k2, (4 * hidden_size, hidden_size), jnp.float32, -k, k),
            jax.random.uniform(k3, (4 * hidden_size,), jnp.float32, -k, k),
            jax.random.uniform(k4, (4 * hidden_size,), jnp.float32, -k, k),
        )
    hh = hidden_size // 2
    key, k1, k2, k3, k4 = jax.random.split(key, 5)
    params["fc"] = (
        jax.random.uniform(k1, (hh, hidden_size), jnp.float32, -k, k),
        jax.random.uniform(k2, (hh,), jnp.float32, -k, k),
        jax.random.uniform(k3, (1, hh), jnp.float32, -k, k),
        jax.random.uniform(k4, (1,), jnp.float32, -k, k),
    )
    return params


if __name__ == "__main__":
    B, T, INPUT_SIZE, HIDDEN, NUM_LAYERS = 2, 8, 3, 32, 2

    key = jax.random.PRNGKey(0)
    key, kx, kp = jax.random.split(key, 3)
    x = jax.random.normal(kx, (B, T, INPUT_SIZE), jnp.float32)
    params = init_params(kp, INPUT_SIZE, HIDDEN, NUM_LAYERS)

    y = sohlstm_forward(x, params, NUM_LAYERS)
    y = jax.block_until_ready(y)

    y_ref = sohlstm_reference(x, params, NUM_LAYERS)
    assert y.shape == (B,)
    # bf16 MXU operands (f32 accumulation) loosen the tolerance vs f32 reference.
    assert jnp.allclose(y, y_ref, atol=5e-2, rtol=5e-2), (y, y_ref)

    print("KERNEL_OK")
</pallas_src>

<mosaic_0001>
module attributes {stable_mosaic.version = 11 : i64} {
  func.func @kernel(%arg0: memref<64x3xbf16, #tpu.memory_space<vmem>>, %arg1: memref<3x128xbf16, #tpu.memory_space<vmem>>, %arg2: memref<32x128xbf16, #tpu.memory_space<vmem>>, %arg3: memref<1x128xf32, #tpu.memory_space<vmem>>, %arg4: memref<32x128xbf16, #tpu.memory_space<vmem>>, %arg5: memref<32x128xbf16, #tpu.memory_space<vmem>>, %arg6: memref<1x128xf32, #tpu.memory_space<vmem>>, %arg7: memref<32x16xf32, #tpu.memory_space<vmem>>, %arg8: memref<1x16xf32, #tpu.memory_space<vmem>>, %arg9: memref<1x16xf32, #tpu.memory_space<vmem>>, %arg10: memref<1x1xf32, #tpu.memory_space<vmem>>, %arg11: memref<8x128xf32, #tpu.memory_space<vmem>>, %arg12: memref<8x8x32xf32, #tpu.memory_space<vmem>>, %arg13: memref<8x8x128xf32, #tpu.memory_space<vmem>>) attributes {dimension_semantics = [], scalar_prefetch = 0 : i64, scratch_operands = 2 : i64, tpu.core_type = #tpu.core_type<tc>} {
    %cst = arith.constant 0.000000e+00 : f32
    %0 = vector.broadcast %cst : f32 to vector<8x32xf32>
    %c0 = arith.constant 0 : index
    %c0_0 = arith.constant 0 : index
    %1 = vector.load %arg0[%c0, %c0_0] : memref<64x3xbf16, #tpu.memory_space<vmem>>, vector<64x3xbf16>
    %c0_1 = arith.constant 0 : index
    %c0_2 = arith.constant 0 : index
    %2 = vector.load %arg1[%c0_1, %c0_2] : memref<3x128xbf16, #tpu.memory_space<vmem>>, vector<3x128xbf16>
    %cst_3 = arith.constant dense<0.000000e+00> : vector<64x128xf32>
    %3 = tpu.matmul %1, %2, %cst_3 {dimension_numbers = #tpu.dot_dimension_numbers<[1], [0], [0], [1], [0, 0, 1, 1], [], []>} : vector<64x3xbf16>, vector<3x128xbf16>, vector<64x128xf32> -> vector<64x128xf32>
    %c0_4 = arith.constant 0 : index
    %c0_5 = arith.constant 0 : index
    %4 = vector.load %arg3[%c0_4, %c0_5] : memref<1x128xf32, #tpu.memory_space<vmem>>, vector<1x128xf32>
    %5 = vector.broadcast %4 : vector<1x128xf32> to vector<64x128xf32>
    %6 = arith.addf %3, %5 : vector<64x128xf32>
    %7 = vector.shape_cast %6 : vector<64x128xf32> to vector<8x8x128xf32>
    %c0_6 = arith.constant 0 : index
    %c0_7 = arith.constant 0 : index
    %c0_8 = arith.constant 0 : index
    %8 = vector.load %arg13[%c0_6, %c0_7, %c0_8] : memref<8x8x128xf32, #tpu.memory_space<vmem>>, vector<8x8x128xf32>
    tpu.vector_store %arg13[%c0_6, %c0_7, %c0_8], %7 {strides = array<i32>} : memref<8x8x128xf32, #tpu.memory_space<vmem>>, vector<8x8x128xf32>,
    %c0_9 = arith.constant 0 : index
    %c0_10 = arith.constant 0 : index
    %9 = vector.load %arg2[%c0_9, %c0_10] : memref<32x128xbf16, #tpu.memory_space<vmem>>, vector<32x128xbf16>
    %c0_i32 = arith.constant 0 : i32
    %10 = arith.index_cast %c0_i32 : i32 to index
    %c0_11 = arith.constant 0 : index
    %c0_12 = arith.constant 0 : index
    %11 = vector.load %arg13[%10, %c0_11, %c0_12] : memref<8x8x128xf32, #tpu.memory_space<vmem>>, vector<1x8x128xf32>
    %12 = vector.shape_cast %11 : vector<1x8x128xf32> to vector<8x128xf32>
    %13 = arith.truncf %0 : vector<8x32xf32> to vector<8x32xbf16>
    %cst_13 = arith.constant dense<0.000000e+00> : vector<8x128xf32>
    %14 = tpu.matmul %13, %9, %cst_13 {dimension_numbers = #tpu.dot_dimension_numbers<[1], [0], [0], [1], [0, 0, 1, 1], [], []>} : vector<8x32xbf16>, vector<32x128xbf16>, vector<8x128xf32> -> vector<8x128xf32>
    %15 = arith.addf %12, %14 : vector<8x128xf32>
    %16 = math.tanh %15 : vector<8x128xf32>
    %17 = vector.extract_strided_slice %16 {offsets = [0, 0], sizes = [8, 96], strides = [1, 1]} : vector<8x128xf32> to vector<8x96xf32>
    %cst_14 = arith.constant 5.000000e-01 : f32
    %18 = vector.broadcast %cst_14 : f32 to vector<8x96xf32>
    %19 = arith.mulf %18, %17 : vector<8x96xf32>
    %cst_15 = arith.constant 5.000000e-01 : f32
    %20 = vector.broadcast %cst_15 : f32 to vector<8x96xf32>
    %21 = arith.addf %19, %20 : vector<8x96xf32>
    %22 = vector.extract_strided_slice %21 {offsets = [0, 0], sizes = [8, 32], strides = [1, 1]} : vector<8x96xf32> to vector<8x32xf32>
    %23 = vector.extract_strided_slice %21 {offsets = [0, 32], sizes = [8, 32], strides = [1, 1]} : vector<8x96xf32> to vector<8x32xf32>
    %24 = vector.extract_strided_slice %21 {offsets = [0, 64], sizes = [8, 32], strides = [1, 1]} : vector<8x96xf32> to vector<8x32xf32>
    %25 = vector.extract_strided_slice %16 {offsets = [0, 96], sizes = [8, 32], strides = [1, 1]} : vector<8x128xf32> to vector<8x32xf32>
    %26 = arith.mulf %23, %0 : vector<8x32xf32>
    %27 = arith.mulf %22, %25 : vector<8x32xf32>
    %28 = arith.addf %26, %27 : vector<8x32xf32>
    %29 = math.tanh %28 : vector<8x32xf32>
    %30 = arith.mulf %24, %29 : vector<8x32xf32>
    %31 = arith.index_cast %c0_i32 : i32 to index
    %c0_16 = arith.constant 0 : index
    %c0_17 = arith.constant 0 : index
    %32 = vector.load %arg12[%31, %c0_16, %c0_17] : memref<8x8x32xf32, #tpu.memory_space<vmem>>, vector<1x8x32xf32>
    %33 = vector.shape_cast %32 : vector<1x8x32xf32> to vector<8x32xf32>
    %34 = vector.shape_cast %30 : vector<8x32xf32> to vector<1x8x32xf32>
    tpu.vector_store %arg12[%31, %c0_16, %c0_17], %34 {strides = array<i32>} : memref<8x8x32xf32, #tpu.memory_space<vmem>>, vector<1x8x32xf32>,
    %c1_i32 = arith.constant 1 : i32
    %35 = arith.index_cast %c1_i32 : i32 to index
    %c0_18 = arith.constant 0 : index
    %c0_19 = arith.constant 0 : index
    %36 = vector.load %arg13[%35, %c0_18, %c0_19] : memref<8x8x128xf32, #tpu.memory_space<vmem>>, vector<1x8x128xf32>
    %37 = vector.shape_cast %36 : vector<1x8x128xf32> to vector<8x128xf32>
    %38 = arith.truncf %30 : vector<8x32xf32> to vector<8x32xbf16>
    %cst_20 = arith.constant dense<0.000000e+00> : vector<8x128xf32>
    %39 = tpu.matmul %38, %9, %cst_20 {dimension_numbers = #tpu.dot_dimension_numbers<[1], [0], [0], [1], [0, 0, 1, 1], [], []>} : vector<8x32xbf16>, vector<32x128xbf16>, vector<8x128xf32> -> vector<8x128xf32>
    %40 = arith.addf %37, %39 : vector<8x128xf32>
    %41 = math.tanh %40 : vector<8x128xf32>
    %42 = vector.extract_strided_slice %41 {offsets = [0, 0], sizes = [8, 96], strides = [1, 1]} : vector<8x128xf32> to vector<8x96xf32>
    %cst_21 = arith.constant 5.000000e-01 : f32
    %43 = vector.broadcast %cst_21 : f32 to vector<8x96xf32>
    %44 = arith.mulf %43, %42 : vector<8x96xf32>
    %cst_22 = arith.constant 5.000000e-01 : f32
    %45 = vector.broadcast %cst_22 : f32 to vector<8x96xf32>
    %46 = arith.addf %44, %45 : vector<8x96xf32>
    %47 = vector.extract_strided_slice %46 {offsets = [0, 0], sizes = [8, 32], strides = [1, 1]} : vector<8x96xf32> to vector<8x32xf32>
    %48 = vector.extract_strided_slice %46 {offsets = [0, 32], sizes = [8, 32], strides = [1, 1]} : vector<8x96xf32> to vector<8x32xf32>
    %49 = vector.extract_strided_slice %46 {offsets = [0, 64], sizes = [8, 32], strides = [1, 1]} : vector<8x96xf32> to vector<8x32xf32>
    %50 = vector.extract_strided_slice %41 {offsets = [0, 96], sizes = [8, 32], strides = [1, 1]} : vector<8x128xf32> to vector<8x32xf32>
    %51 = arith.mulf %48, %28 : vector<8x32xf32>
    %52 = arith.mulf %47, %50 : vector<8x32xf32>
    %53 = arith.addf %51, %52 : vector<8x32xf32>
    %54 = math.tanh %53 : vector<8x32xf32>
    %55 = arith.mulf %49, %54 : vector<8x32xf32>
    %56 = arith.index_cast %c1_i32 : i32 to index
    %c0_23 = arith.constant 0 : index
    %c0_24 = arith.constant 0 : index
    %57 = vector.load %arg12[%56, %c0_23, %c0_24] : memref<8x8x32xf32, #tpu.memory_space<vmem>>, vector<1x8x32xf32>
    %58 = vector.shape_cast %57 : vector<1x8x32xf32> to vector<8x32xf32>
    %59 = vector.shape_cast %55 : vector<8x32xf32> to vector<1x8x32xf32>
    tpu.vector_store %arg12[%56, %c0_23, %c0_24], %59 {strides = array<i32>} : memref<8x8x32xf32, #tpu.memory_space<vmem>>, vector<1x8x32xf32>,
    %c2_i32 = arith.constant 2 : i32
    %60 = arith.index_cast %c2_i32 : i32 to index
    %c0_25 = arith.constant 0 : index
    %c0_26 = arith.constant 0 : index
    %61 = vector.load %arg13[%60, %c0_25, %c0_26] : memref<8x8x128xf32, #tpu.memory_space<vmem>>, vector<1x8x128xf32>
    %62 = vector.shape_cast %61 : vector<1x8x128xf32> to vector<8x128xf32>
    %63 = arith.truncf %55 : vector<8x32xf32> to vector<8x32xbf16>
    %cst_27 = arith.constant dense<0.000000e+00> : vector<8x128xf32>
    %64 = tpu.matmul %63, %9, %cst_27 {dimension_numbers = #tpu.dot_dimension_numbers<[1], [0], [0], [1], [0, 0, 1, 1], [], []>} : vector<8x32xbf16>, vector<32x128xbf16>, vector<8x128xf32> -> vector<8x128xf32>
    %65 = arith.addf %62, %64 : vector<8x128xf32>
    %66 = math.tanh %65 : vector<8x128xf32>
    %67 = vector.extract_strided_slice %66 {offsets = [0, 0], sizes = [8, 96], strides = [1, 1]} : vector<8x128xf32> to vector<8x96xf32>
    %cst_28 = arith.constant 5.000000e-01 : f32
    %68 = vector.broadcast %cst_28 : f32 to vector<8x96xf32>
    %69 = arith.mulf %68, %67 : vector<8x96xf32>
    %cst_29 = arith.constant 5.000000e-01 : f32
    %70 = vector.broadcast %cst_29 : f32 to vector<8x96xf32>
    %71 = arith.addf %69, %70 : vector<8x96xf32>
    %72 = vector.extract_strided_slice %71 {offsets = [0, 0], sizes = [8, 32], strides = [1, 1]} : vector<8x96xf32> to vector<8x32xf32>
    %73 = vector.extract_strided_slice %71 {offsets = [0, 32], sizes = [8, 32], strides = [1, 1]} : vector<8x96xf32> to vector<8x32xf32>
    %74 = vector.extract_strided_slice %71 {offsets = [0, 64], sizes = [8, 32], strides = [1, 1]} : vector<8x96xf32> to vector<8x32xf32>
    %75 = vector.extract_strided_slice %66 {offsets = [0, 96], sizes = [8, 32], strides = [1, 1]} : vector<8x128xf32> to vector<8x32xf32>
    %76 = arith.mulf %73, %53 : vector<8x32xf32>
    %77 = arith.mulf %72, %75 : vector<8x32xf32>
    %78 = arith.addf %76, %77 : vector<8x32xf32>
    %79 = math.tanh %78 : vector<8x32xf32>
    %80 = arith.mulf %74, %79 : vector<8x32xf32>
    %81 = arith.index_cast %c2_i32 : i32 to index
    %c0_30 = arith.constant 0 : index
    %c0_31 = arith.constant 0 : index
    %82 = vector.load %arg12[%81, %c0_30, %c0_31] : memref<8x8x32xf32, #tpu.memory_space<vmem>>, vector<1x8x32xf32>
    %83 = vector.shape_cast %82 : vector<1x8x32xf32> to vector<8x32xf32>
    %84 = vector.shape_cast %80 : vector<8x32xf32> to vector<1x8x32xf32>
    tpu.vector_store %arg12[%81, %c0_30, %c0_31], %84 {strides = array<i32>} : memref<8x8x32xf32, #tpu.memory_space<vmem>>, vector<1x8x32xf32>,
    %c3_i32 = arith.constant 3 : i32
    %85 = arith.index_cast %c3_i32 : i32 to index
    %c0_32 = arith.constant 0 : index
    %c0_33 = arith.constant 0 : index
    %86 = vector.load %arg13[%85, %c0_32, %c0_33] : memref<8x8x128xf32, #tpu.memory_space<vmem>>, vector<1x8x128xf32>
    %87 = vector.shape_cast %86 : vector<1x8x128xf32> to vector<8x128xf32>
    %88 = arith.truncf %80 : vector<8x32xf32> to vector<8x32xbf16>
    %cst_34 = arith.constant dense<0.000000e+00> : vector<8x128xf32>
    %89 = tpu.matmul %88, %9, %cst_34 {dimension_numbers = #tpu.dot_dimension_numbers<[1], [0], [0], [1], [0, 0, 1, 1], [], []>} : vector<8x32xbf16>, vector<32x128xbf16>, vector<8x128xf32> -> vector<8x128xf32>
    %90 = arith.addf %87, %89 : vector<8x128xf32>
    %91 = math.tanh %90 : vector<8x128xf32>
    %92 = vector.extract_strided_slice %91 {offsets = [0, 0], sizes = [8, 96], strides = [1, 1]} : vector<8x128xf32> to vector<8x96xf32>
    %cst_35 = arith.constant 5.000000e-01 : f32
    %93 = vector.broadcast %cst_35 : f32 to vector<8x96xf32>
    %94 = arith.mulf %93, %92 : vector<8x96xf32>
    %cst_36 = arith.constant 5.000000e-01 : f32
    %95 = vector.broadcast %cst_36 : f32 to vector<8x96xf32>
    %96 = arith.addf %94, %95 : vector<8x96xf32>
    %97 = vector.extract_strided_slice %96 {offsets = [0, 0], sizes = [8, 32], strides = [1, 1]} : vector<8x96xf32> to vector<8x32xf32>
    %98 = vector.extract_strided_slice %96 {offsets = [0, 32], sizes = [8, 32], strides = [1, 1]} : vector<8x96xf32> to vector<8x32xf32>
    %99 = vector.extract_strided_slice %96 {offsets = [0, 64], sizes = [8, 32], strides = [1, 1]} : vector<8x96xf32> to vector<8x32xf32>
    %100 = vector.extract_strided_slice %91 {offsets = [0, 96], sizes = [8, 32], strides = [1, 1]} : vector<8x128xf32> to vector<8x32xf32>
    %101 = arith.mulf %98, %78 : vector<8x32xf32>
    %102 = arith.mulf %97, %100 : vector<8x32xf32>
    %103 = arith.addf %101, %102 : vector<8x32xf32>
    %104 = math.tanh %103 : vector<8x32xf32>
    %105 = arith.mulf %99, %104 : vector<8x32xf32>
    %106 = arith.index_cast %c3_i32 : i32 to index
    %c0_37 = arith.constant 0 : index
    %c0_38 = arith.constant 0 : index
    %107 = vector.load %arg12[%106, %c0_37, %c0_38] : memref<8x8x32xf32, #tpu.memory_space<vmem>>, vector<1x8x32xf32>
    %108 = vector.shape_cast %107 : vector<1x8x32xf32> to vector<8x32xf32>
    %109 = vector.shape_cast %105 : vector<8x32xf32> to vector<1x8x32xf32>
    tpu.vector_store %arg12[%106, %c0_37, %c0_38], %109 {strides = array<i32>} : memref<8x8x32xf32, #tpu.memory_space<vmem>>, vector<1x8x32xf32>,
    %c4_i32 = arith.constant 4 : i32
    %110 = arith.index_cast %c4_i32 : i32 to index
    %c0_39 = arith.constant 0 : index
    %c0_40 = arith.constant 0 : index
    %111 = vector.load %arg13[%110, %c0_39, %c0_40] : memref<8x8x128xf32, #tpu.memory_space<vmem>>, vector<1x8x128xf32>
    %112 = vector.shape_cast %111 : vector<1x8x128xf32> to vector<8x128xf32>
    %113 = arith.truncf %105 : vector<8x32xf32> to vector<8x32xbf16>
    %cst_41 = arith.constant dense<0.000000e+00> : vector<8x128xf32>
    %114 = tpu.matmul %113, %9, %cst_41 {dimension_numbers = #tpu.dot_dimension_numbers<[1], [0], [0], [1], [0, 0, 1, 1], [], []>} : vector<8x32xbf16>, vector<32x128xbf16>, vector<8x128xf32> -> vector<8x128xf32>
    %115 = arith.addf %112, %114 : vector<8x128xf32>
    %116 = math.tanh %115 : vector<8x128xf32>
    %117 = vector.extract_strided_slice %116 {offsets = [0, 0], sizes = [8, 96], strides = [1, 1]} : vector<8x128xf32> to vector<8x96xf32>
    %cst_42 = arith.constant 5.000000e-01 : f32
    %118 = vector.broadcast %cst_42 : f32 to vector<8x96xf32>
    %119 = arith.mulf %118, %117 : vector<8x96xf32>
    %cst_43 = arith.constant 5.000000e-01 : f32
    %120 = vector.broadcast %cst_43 : f32 to vector<8x96xf32>
    %121 = arith.addf %119, %120 : vector<8x96xf32>
    %122 = vector.extract_strided_slice %121 {offsets = [0, 0], sizes = [8, 32], strides = [1, 1]} : vector<8x96xf32> to vector<8x32xf32>
    %123 = vector.extract_strided_slice %121 {offsets = [0, 32], sizes = [8, 32], strides = [1, 1]} : vector<8x96xf32> to vector<8x32xf32>
    %124 = vector.extract_strided_slice %121 {offsets = [0, 64], sizes = [8, 32], strides = [1, 1]} : vector<8x96xf32> to vector<8x32xf32>
    %125 = vector.extract_strided_slice %116 {offsets = [0, 96], sizes = [8, 32], strides = [1, 1]} : vector<8x128xf32> to vector<8x32xf32>
    %126 = arith.mulf %123, %103 : vector<8x32xf32>
    %127 = arith.mulf %122, %125 : vector<8x32xf32>
    %128 = arith.addf %126, %127 : vector<8x32xf32>
    %129 = math.tanh %128 : vector<8x32xf32>
    %130 = arith.mulf %124, %129 : vector<8x32xf32>
    %131 = arith.index_cast %c4_i32 : i32 to index
    %c0_44 = arith.constant 0 : index
    %c0_45 = arith.constant 0 : index
    %132 = vector.load %arg12[%131, %c0_44, %c0_45] : memref<8x8x32xf32, #tpu.memory_space<vmem>>, vector<1x8x32xf32>
    %133 = vector.shape_cast %132 : vector<1x8x32xf32> to vector<8x32xf32>
    %134 = vector.shape_cast %130 : vector<8x32xf32> to vector<1x8x32xf32>
    tpu.vector_store %arg12[%131, %c0_44, %c0_45], %134 {strides = array<i32>} : memref<8x8x32xf32, #tpu.memory_space<vmem>>, vector<1x8x32xf32>,
    %c5_i32 = arith.constant 5 : i32
    %135 = arith.index_cast %c5_i32 : i32 to index
    %c0_46 = arith.constant 0 : index
    %c0_47 = arith.constant 0 : index
    %136 = vector.load %arg13[%135, %c0_46, %c0_47] : memref<8x8x128xf32, #tpu.memory_space<vmem>>, vector<1x8x128xf32>
    %137 = vector.shape_cast %136 : vector<1x8x128xf32> to vector<8x128xf32>
    %138 = arith.truncf %130 : vector<8x32xf32> to vector<8x32xbf16>
    %cst_48 = arith.constant dense<0.000000e+00> : vector<8x128xf32>
    %139 = tpu.matmul %138, %9, %cst_48 {dimension_numbers = #tpu.dot_dimension_numbers<[1], [0], [0], [1], [0, 0, 1, 1], [], []>} : vector<8x32xbf16>, vector<32x128xbf16>, vector<8x128xf32> -> vector<8x128xf32>
    %140 = arith.addf %137, %139 : vector<8x128xf32>
    %141 = math.tanh %140 : vector<8x128xf32>
    %142 = vector.extract_strided_slice %141 {offsets = [0, 0], sizes = [8, 96], strides = [1, 1]} : vector<8x128xf32> to vector<8x96xf32>
    %cst_49 = arith.constant 5.000000e-01 : f32
    %143 = vector.broadcast %cst_49 : f32 to vector<8x96xf32>
    %144 = arith.mulf %143, %142 : vector<8x96xf32>
    %cst_50 = arith.constant 5.000000e-01 : f32
    %145 = vector.broadcast %cst_50 : f32 to vector<8x96xf32>
    %146 = arith.addf %144, %145 : vector<8x96xf32>
    %147 = vector.extract_strided_slice %146 {offsets = [0, 0], sizes = [8, 32], strides = [1, 1]} : vector<8x96xf32> to vector<8x32xf32>
    %148 = vector.extract_strided_slice %146 {offsets = [0, 32], sizes = [8, 32], strides = [1, 1]} : vector<8x96xf32> to vector<8x32xf32>
    %149 = vector.extract_strided_slice %146 {offsets = [0, 64], sizes = [8, 32], strides = [1, 1]} : vector<8x96xf32> to vector<8x32xf32>
    %150 = vector.extract_strided_slice %141 {offsets = [0, 96], sizes = [8, 32], strides = [1, 1]} : vector<8x128xf32> to vector<8x32xf32>
    %151 = arith.mulf %148, %128 : vector<8x32xf32>
    %152 = arith.mulf %147, %150 : vector<8x32xf32>
    %153 = arith.addf %151, %152 : vector<8x32xf32>
    %154 = math.tanh %153 : vector<8x32xf32>
    %155 = arith.mulf %149, %154 : vector<8x32xf32>
    %156 = arith.index_cast %c5_i32 : i32 to index
    %c0_51 = arith.constant 0 : index
    %c0_52 = arith.constant 0 : index
    %157 = vector.load %arg12[%156, %c0_51, %c0_52] : memref<8x8x32xf32, #tpu.memory_space<vmem>>, vector<1x8x32xf32>
    %158 = vector.shape_cast %157 : vector<1x8x32xf32> to vector<8x32xf32>
    %159 = vector.shape_cast %155 : vector<8x32xf32> to vector<1x8x32xf32>
    tpu.vector_store %arg12[%156, %c0_51, %c0_52], %159 {strides = array<i32>} : memref<8x8x32xf32, #tpu.memory_space<vmem>>, vector<1x8x32xf32>,
    %c6_i32 = arith.constant 6 : i32
    %160 = arith.index_cast %c6_i32 : i32 to index
    %c0_53 = arith.constant 0 : index
    %c0_54 = arith.constant 0 : index
    %161 = vector.load %arg13[%160, %c0_53, %c0_54] : memref<8x8x128xf32, #tpu.memory_space<vmem>>, vector<1x8x128xf32>
    %162 = vector.shape_cast %161 : vector<1x8x128xf32> to vector<8x128xf32>
    %163 = arith.truncf %155 : vector<8x32xf32> to vector<8x32xbf16>
    %cst_55 = arith.constant dense<0.000000e+00> : vector<8x128xf32>
    %164 = tpu.matmul %163, %9, %cst_55 {dimension_numbers = #tpu.dot_dimension_numbers<[1], [0], [0], [1], [0, 0, 1, 1], [], []>} : vector<8x32xbf16>, vector<32x128xbf16>, vector<8x128xf32> -> vector<8x128xf32>
    %165 = arith.addf %162, %164 : vector<8x128xf32>
    %166 = math.tanh %165 : vector<8x128xf32>
    %167 = vector.extract_strided_slice %166 {offsets = [0, 0], sizes = [8, 96], strides = [1, 1]} : vector<8x128xf32> to vector<8x96xf32>
    %cst_56 = arith.constant 5.000000e-01 : f32
    %168 = vector.broadcast %cst_56 : f32 to vector<8x96xf32>
    %169 = arith.mulf %168, %167 : vector<8x96xf32>
    %cst_57 = arith.constant 5.000000e-01 : f32
    %170 = vector.broadcast %cst_57 : f32 to vector<8x96xf32>
    %171 = arith.addf %169, %170 : vector<8x96xf32>
    %172 = vector.extract_strided_slice %171 {offsets = [0, 0], sizes = [8, 32], strides = [1, 1]} : vector<8x96xf32> to vector<8x32xf32>
    %173 = vector.extract_strided_slice %171 {offsets = [0, 32], sizes = [8, 32], strides = [1, 1]} : vector<8x96xf32> to vector<8x32xf32>
    %174 = vector.extract_strided_slice %171 {offsets = [0, 64], sizes = [8, 32], strides = [1, 1]} : vector<8x96xf32> to vector<8x32xf32>
    %175 = vector.extract_strided_slice %166 {offsets = [0, 96], sizes = [8, 32], strides = [1, 1]} : vector<8x128xf32> to vector<8x32xf32>
    %176 = arith.mulf %173, %153 : vector<8x32xf32>
    %177 = arith.mulf %172, %175 : vector<8x32xf32>
    %178 = arith.addf %176, %177 : vector<8x32xf32>
    %179 = math.tanh %178 : vector<8x32xf32>
    %180 = arith.mulf %174, %179 : vector<8x32xf32>
    %181 = arith.index_cast %c6_i32 : i32 to index
    %c0_58 = arith.constant 0 : index
    %c0_59 = arith.constant 0 : index
    %182 = vector.load %arg12[%181, %c0_58, %c0_59] : memref<8x8x32xf32, #tpu.memory_space<vmem>>, vector<1x8x32xf32>
    %183 = vector.shape_cast %182 : vector<1x8x32xf32> to vector<8x32xf32>
    %184 = vector.shape_cast %180 : vector<8x32xf32> to vector<1x8x32xf32>
    tpu.vector_store %arg12[%181, %c0_58, %c0_59], %184 {strides = array<i32>} : memref<8x8x32xf32, #tpu.memory_space<vmem>>, vector<1x8x32xf32>,
    %c7_i32 = arith.constant 7 : i32
    %185 = arith.index_cast %c7_i32 : i32 to index
    %c0_60 = arith.constant 0 : index
    %c0_61 = arith.constant 0 : index
    %186 = vector.load %arg13[%185, %c0_60, %c0_61] : memref<8x8x128xf32, #tpu.memory_space<vmem>>, vector<1x8x128xf32>
    %187 = vector.shape_cast %186 : vector<1x8x128xf32> to vector<8x128xf32>
    %188 = arith.truncf %180 : vector<8x32xf32> to vector<8x32xbf16>
    %cst_62 = arith.constant dense<0.000000e+00> : vector<8x128xf32>
    %189 = tpu.matmul %188, %9, %cst_62 {dimension_numbers = #tpu.dot_dimension_numbers<[1], [0], [0], [1], [0, 0, 1, 1], [], []>} : vector<8x32xbf16>, vector<32x128xbf16>, vector<8x128xf32> -> vector<8x128xf32>
    %190 = arith.addf %187, %189 : vector<8x128xf32>
    %191 = math.tanh %190 : vector<8x128xf32>
    %192 = vector.extract_strided_slice %191 {offsets = [0, 0], sizes = [8, 96], strides = [1, 1]} : vector<8x128xf32> to vector<8x96xf32>
    %cst_63 = arith.constant 5.000000e-01 : f32
    %193 = vector.broadcast %cst_63 : f32 to vector<8x96xf32>
    %194 = arith.mulf %193, %192 : vector<8x96xf32>
    %cst_64 = arith.constant 5.000000e-01 : f32
    %195 = vector.broadcast %cst_64 : f32 to vector<8x96xf32>
    %196 = arith.addf %194, %195 : vector<8x96xf32>
    %197 = vector.extract_strided_slice %196 {offsets = [0, 0], sizes = [8, 32], strides = [1, 1]} : vector<8x96xf32> to vector<8x32xf32>
    %198 = vector.extract_strided_slice %196 {offsets = [0, 32], sizes = [8, 32], strides = [1, 1]} : vector<8x96xf32> to vector<8x32xf32>
    %199 = vector.extract_strided_slice %196 {offsets = [0, 64], sizes = [8, 32], strides = [1, 1]} : vector<8x96xf32> to vector<8x32xf32>
    %200 = vector.extract_strided_slice %191 {offsets = [0, 96], sizes = [8, 32], strides = [1, 1]} : vector<8x128xf32> to vector<8x32xf32>
    %201 = arith.mulf %198, %178 : vector<8x32xf32>
    %202 = arith.mulf %197, %200 : vector<8x32xf32>
    %203 = arith.addf %201, %202 : vector<8x32xf32>
    %204 = math.tanh %203 : vector<8x32xf32>
    %205 = arith.mulf %199, %204 : vector<8x32xf32>
    %206 = arith.index_cast %c7_i32 : i32 to index
    %c0_65 = arith.constant 0 : index
    %c0_66 = arith.constant 0 : index
    %207 = vector.load %arg12[%206, %c0_65, %c0_66] : memref<8x8x32xf32, #tpu.memory_space<vmem>>, vector<1x8x32xf32>
    %208 = vector.shape_cast %207 : vector<1x8x32xf32> to vector<8x32xf32>
    %209 = vector.shape_cast %205 : vector<8x32xf32> to vector<1x8x32xf32>
    tpu.vector_store %arg12[%206, %c0_65, %c0_66], %209 {strides = array<i32>} : memref<8x8x32xf32, #tpu.memory_space<vmem>>, vector<1x8x32xf32>,
    %c8_i32 = arith.constant 8 : i32
    %c0_67 = arith.constant 0 : index
    %c0_68 = arith.constant 0 : index
    %c0_69 = arith.constant 0 : index
    %210 = vector.load %arg12[%c0_67, %c0_68, %c0_69] : memref<8x8x32xf32, #tpu.memory_space<vmem>>, vector<8x8x32xf32>
    %211 = vector.shape_cast %210 : vector<8x8x32xf32> to vector<64x32xf32>
    %212 = arith.truncf %211 : vector<64x32xf32> to vector<64x32xbf16>
    %c0_70 = arith.constant 0 : index
    %c0_71 = arith.constant 0 : index
    %213 = vector.load %arg4[%c0_70, %c0_71] : memref<32x128xbf16, #tpu.memory_space<vmem>>, vector<32x128xbf16>
    %cst_72 = arith.constant dense<0.000000e+00> : vector<64x128xf32>
    %214 = tpu.matmul %212, %213, %cst_72 {dimension_numbers = #tpu.dot_dimension_numbers<[1], [0], [0], [1], [0, 0, 1, 1], [], []>} : vector<64x32xbf16>, vector<32x128xbf16>, vector<64x128xf32> -> vector<64x128xf32>
    %c0_73 = arith.constant 0 : index
    %c0_74 = arith.constant 0 : index
    %215 = vector.load %arg6[%c0_73, %c0_74] : memref<1x128xf32, #tpu.memory_space<vmem>>, vector<1x128xf32>
    %216 = vector.broadcast %215 : vector<1x128xf32> to vector<64x128xf32>
    %217 = arith.addf %214, %216 : vector<64x128xf32>
    %218 = vector.shape_cast %217 : vector<64x128xf32> to vector<8x8x128xf32>
    %c0_75 = arith.constant 0 : index
    %c0_76 = arith.constant 0 : index
    %c0_77 = arith.constant 0 : index
    %219 = vector.load %arg13[%c0_75, %c0_76, %c0_77] : memref<8x8x128xf32, #tpu.memory_space<vmem>>, vector<8x8x128xf32>
    tpu.vector_store %arg13[%c0_75, %c0_76, %c0_77], %218 {strides = array<i32>} : memref<8x8x128xf32, #tpu.memory_space<vmem>>, vector<8x8x128xf32>,
    %c0_78 = arith.constant 0 : index
    %c0_79 = arith.constant 0 : index
    %220 = vector.load %arg5[%c0_78, %c0_79] : memref<32x128xbf16, #tpu.memory_space<vmem>>, vector<32x128xbf16>
    %c0_i32_80 = arith.constant 0 : i32
    %221 = arith.index_cast %c0_i32_80 : i32 to index
    %c0_81 = arith.constant 0 : index
    %c0_82 = arith.constant 0 : index
    %222 = vector.load %arg13[%221, %c0_81, %c0_82] : memref<8x8x128xf32, #tpu.memory_space<vmem>>, vector<1x8x128xf32>
    %223 = vector.shape_cast %222 : vector<1x8x128xf32> to vector<8x128xf32>
    %224 = arith.truncf %0 : vector<8x32xf32> to vector<8x32xbf16>
    %cst_83 = arith.constant dense<0.000000e+00> : vector<8x128xf32>
    %225 = tpu.matmul %224, %220, %cst_83 {dimension_numbers = #tpu.dot_dimension_numbers<[1], [0], [0], [1], [0, 0, 1, 1], [], []>} : vector<8x32xbf16>, vector<32x128xbf16>, vector<8x128xf32> -> vector<8x128xf32>
    %226 = arith.addf %223, %225 : vector<8x128xf32>
    %227 = math.tanh %226 : vector<8x128xf32>
    %228 = vector.extract_strided_slice %227 {offsets = [0, 0], sizes = [8, 96], strides = [1, 1]} : vector<8x128xf32> to vector<8x96xf32>
    %cst_84 = arith.constant 5.000000e-01 : f32
    %229 = vector.broadcast %cst_84 : f32 to vector<8x96xf32>
    %230 = arith.mulf %229, %228 : vector<8x96xf32>
    %cst_85 = arith.constant 5.000000e-01 : f32
    %231 = vector.broadcast %cst_85 : f32 to vector<8x96xf32>
    %232 = arith.addf %230, %231 : vector<8x96xf32>
    %233 = vector.extract_strided_slice %232 {offsets = [0, 0], sizes = [8, 32], strides = [1, 1]} : vector<8x96xf32> to vector<8x32xf32>
    %234 = vector.extract_strided_slice %232 {offsets = [0, 32], sizes = [8, 32], strides = [1, 1]} : vector<8x96xf32> to vector<8x32xf32>
    %235 = vector.extract_strided_slice %232 {offsets = [0, 64], sizes = [8, 32], strides = [1, 1]} : vector<8x96xf32> to vector<8x32xf32>
    %236 = vector.extract_strided_slice %227 {offsets = [0, 96], sizes = [8, 32], strides = [1, 1]} : vector<8x128xf32> to vector<8x32xf32>
    %237 = arith.mulf %234, %0 : vector<8x32xf32>
    %238 = arith.mulf %233, %236 : vector<8x32xf32>
    %239 = arith.addf %237, %238 : vector<8x32xf32>
    %240 = math.tanh %239 : vector<8x32xf32>
    %241 = arith.mulf %235, %240 : vector<8x32xf32>
    %c1_i32_86 = arith.constant 1 : i32
    %242 = arith.index_cast %c1_i32_86 : i32 to index
    %c0_87 = arith.constant 0 : index
    %c0_88 = arith.constant 0 : index
    %243 = vector.load %arg13[%242, %c0_87, %c0_88] : memref<8x8x128xf32, #tpu.memory_space<vmem>>, vector<1x8x128xf32>
    %244 = vector.shape_cast %243 : vector<1x8x128xf32> to vector<8x128xf32>
    %245 = arith.truncf %241 : vector<8x32xf32> to vector<8x32xbf16>
    %cst_89 = arith.constant dense<0.000000e+00> : vector<8x128xf32>
    %246 = tpu.matmul %245, %220, %cst_89 {dimension_numbers = #tpu.dot_dimension_numbers<[1], [0], [0], [1], [0, 0, 1, 1], [], []>} : vector<8x32xbf16>, vector<32x128xbf16>, vector<8x128xf32> -> vector<8x128xf32>
    %247 = arith.addf %244, %246 : vector<8x128xf32>
    %248 = math.tanh %247 : vector<8x128xf32>
    %249 = vector.extract_strided_slice %248 {offsets = [0, 0], sizes = [8, 96], strides = [1, 1]} : vector<8x128xf32> to vector<8x96xf32>
    %cst_90 = arith.constant 5.000000e-01 : f32
    %250 = vector.broadcast %cst_90 : f32 to vector<8x96xf32>
    %251 = arith.mulf %250, %249 : vector<8x96xf32>
    %cst_91 = arith.constant 5.000000e-01 : f32
    %252 = vector.broadcast %cst_91 : f32 to vector<8x96xf32>
    %253 = arith.addf %251, %252 : vector<8x96xf32>
    %254 = vector.extract_strided_slice %253 {offsets = [0, 0], sizes = [8, 32], strides = [1, 1]} : vector<8x96xf32> to vector<8x32xf32>
    %255 = vector.extract_strided_slice %253 {offsets = [0, 32], sizes = [8, 32], strides = [1, 1]} : vector<8x96xf32> to vector<8x32xf32>
    %256 = vector.extract_strided_slice %253 {offsets = [0, 64], sizes = [8, 32], strides = [1, 1]} : vector<8x96xf32> to vector<8x32xf32>
    %257 = vector.extract_strided_slice %248 {offsets = [0, 96], sizes = [8, 32], strides = [1, 1]} : vector<8x128xf32> to vector<8x32xf32>
    %258 = arith.mulf %255, %239 : vector<8x32xf32>
    %259 = arith.mulf %254, %257 : vector<8x32xf32>
    %260 = arith.addf %258, %259 : vector<8x32xf32>
    %261 = math.tanh %260 : vector<8x32xf32>
    %262 = arith.mulf %256, %261 : vector<8x32xf32>
    %c2_i32_92 = arith.constant 2 : i32
    %263 = arith.index_cast %c2_i32_92 : i32 to index
    %c0_93 = arith.constant 0 : index
    %c0_94 = arith.constant 0 : index
    %264 = vector.load %arg13[%263, %c0_93, %c0_94] : memref<8x8x128xf32, #tpu.memory_space<vmem>>, vector<1x8x128xf32>
    %265 = vector.shape_cast %264 : vector<1x8x128xf32> to vector<8x128xf32>
    %266 = arith.truncf %262 : vector<8x32xf32> to vector<8x32xbf16>
    %cst_95 = arith.constant dense<0.000000e+00> : vector<8x128xf32>
    %267 = tpu.matmul %266, %220, %cst_95 {dimension_numbers = #tpu.dot_dimension_numbers<[1], [0], [0], [1], [0, 0, 1, 1], [], []>} : vector<8x32xbf16>, vector<32x128xbf16>, vector<8x128xf32> -> vector<8x128xf32>
    %268 = arith.addf %265, %267 : vector<8x128xf32>
    %269 = math.tanh %268 : vector<8x128xf32>
    %270 = vector.extract_strided_slice %269 {offsets = [0, 0], sizes = [8, 96], strides = [1, 1]} : vector<8x128xf32> to vector<8x96xf32>
    %cst_96 = arith.constant 5.000000e-01 : f32
    %271 = vector.broadcast %cst_96 : f32 to vector<8x96xf32>
    %272 = arith.mulf %271, %270 : vector<8x96xf32>
    %cst_97 = arith.constant 5.000000e-01 : f32
    %273 = vector.broadcast %cst_97 : f32 to vector<8x96xf32>
    %274 = arith.addf %272, %273 : vector<8x96xf32>
    %275 = vector.extract_strided_slice %274 {offsets = [0, 0], sizes = [8, 32], strides = [1, 1]} : vector<8x96xf32> to vector<8x32xf32>
    %276 = vector.extract_strided_slice %274 {offsets = [0, 32], sizes = [8, 32], strides = [1, 1]} : vector<8x96xf32> to vector<8x32xf32>
    %277 = vector.extract_strided_slice %274 {offsets = [0, 64], sizes = [8, 32], strides = [1, 1]} : vector<8x96xf32> to vector<8x32xf32>
    %278 = vector.extract_strided_slice %269 {offsets = [0, 96], sizes = [8, 32], strides = [1, 1]} : vector<8x128xf32> to vector<8x32xf32>
    %279 = arith.mulf %276, %260 : vector<8x32xf32>
    %280 = arith.mulf %275, %278 : vector<8x32xf32>
    %281 = arith.addf %279, %280 : vector<8x32xf32>
    %282 = math.tanh %281 : vector<8x32xf32>
    %283 = arith.mulf %277, %282 : vector<8x32xf32>
    %c3_i32_98 = arith.constant 3 : i32
    %284 = arith.index_cast %c3_i32_98 : i32 to index
    %c0_99 = arith.constant 0 : index
    %c0_100 = arith.constant 0 : index
    %285 = vector.load %arg13[%284, %c0_99, %c0_100] : memref<8x8x128xf32, #tpu.memory_space<vmem>>, vector<1x8x128xf32>
    %286 = vector.shape_cast %285 : vector<1x8x128xf32> to vector<8x128xf32>
    %287 = arith.truncf %283 : vector<8x32xf32> to vector<8x32xbf16>
    %cst_101 = arith.constant dense<0.000000e+00> : vector<8x128xf32>
    %288 = tpu.matmul %287, %220, %cst_101 {dimension_numbers = #tpu.dot_dimension_numbers<[1], [0], [0], [1], [0, 0, 1, 1], [], []>} : vector<8x32xbf16>, vector<32x128xbf16>, vector<8x128xf32> -> vector<8x128xf32>
    %289 = arith.addf %286, %288 : vector<8x128xf32>
    %290 = math.tanh %289 : vector<8x128xf32>
    %291 = vector.extract_strided_slice %290 {offsets = [0, 0], sizes = [8, 96], strides = [1, 1]} : vector<8x128xf32> to vector<8x96xf32>
    %cst_102 = arith.constant 5.000000e-01 : f32
    %292 = vector.broadcast %cst_102 : f32 to vector<8x96xf32>
    %293 = arith.mulf %292, %291 : vector<8x96xf32>
    %cst_103 = arith.constant 5.000000e-01 : f32
    %294 = vector.broadcast %cst_103 : f32 to vector<8x96xf32>
    %295 = arith.addf %293, %294 : vector<8x96xf32>
    %296 = vector.extract_strided_slice %295 {offsets = [0, 0], sizes = [8, 32], strides = [1, 1]} : vector<8x96xf32> to vector<8x32xf32>
    %297 = vector.extract_strided_slice %295 {offsets = [0, 32], sizes = [8, 32], strides = [1, 1]} : vector<8x96xf32> to vector<8x32xf32>
    %298 = vector.extract_strided_slice %295 {offsets = [0, 64], sizes = [8, 32], strides = [1, 1]} : vector<8x96xf32> to vector<8x32xf32>
    %299 = vector.extract_strided_slice %290 {offsets = [0, 96], sizes = [8, 32], strides = [1, 1]} : vector<8x128xf32> to vector<8x32xf32>
    %300 = arith.mulf %297, %281 : vector<8x32xf32>
    %301 = arith.mulf %296, %299 : vector<8x32xf32>
    %302 = arith.addf %300, %301 : vector<8x32xf32>
    %303 = math.tanh %302 : vector<8x32xf32>
    %304 = arith.mulf %298, %303 : vector<8x32xf32>
    %c4_i32_104 = arith.constant 4 : i32
    %305 = arith.index_cast %c4_i32_104 : i32 to index
    %c0_105 = arith.constant 0 : index
    %c0_106 = arith.constant 0 : index
    %306 = vector.load %arg13[%305, %c0_105, %c0_106] : memref<8x8x128xf32, #tpu.memory_space<vmem>>, vector<1x8x128xf32>
    %307 = vector.shape_cast %306 : vector<1x8x128xf32> to vector<8x128xf32>
    %308 = arith.truncf %304 : vector<8x32xf32> to vector<8x32xbf16>
    %cst_107 = arith.constant dense<0.000000e+00> : vector<8x128xf32>
    %309 = tpu.matmul %308, %220, %cst_107 {dimension_numbers = #tpu.dot_dimension_numbers<[1], [0], [0], [1], [0, 0, 1, 1], [], []>} : vector<8x32xbf16>, vector<32x128xbf16>, vector<8x128xf32> -> vector<8x128xf32>
    %310 = arith.addf %307, %309 : vector<8x128xf32>
    %311 = math.tanh %310 : vector<8x128xf32>
    %312 = vector.extract_strided_slice %311 {offsets = [0, 0], sizes = [8, 96], strides = [1, 1]} : vector<8x128xf32> to vector<8x96xf32>
    %cst_108 = arith.constant 5.000000e-01 : f32
    %313 = vector.broadcast %cst_108 : f32 to vector<8x96xf32>
    %314 = arith.mulf %313, %312 : vector<8x96xf32>
    %cst_109 = arith.constant 5.000000e-01 : f32
    %315 = vector.broadcast %cst_109 : f32 to vector<8x96xf32>
    %316 = arith.addf %314, %315 : vector<8x96xf32>
    %317 = vector.extract_strided_slice %316 {offsets = [0, 0], sizes = [8, 32], strides = [1, 1]} : vector<8x96xf32> to vector<8x32xf32>
    %318 = vector.extract_strided_slice %316 {offsets = [0, 32], sizes = [8, 32], strides = [1, 1]} : vector<8x96xf32> to vector<8x32xf32>
    %319 = vector.extract_strided_slice %316 {offsets = [0, 64], sizes = [8, 32], strides = [1, 1]} : vector<8x96xf32> to vector<8x32xf32>
    %320 = vector.extract_strided_slice %311 {offsets = [0, 96], sizes = [8, 32], strides = [1, 1]} : vector<8x128xf32> to vector<8x32xf32>
    %321 = arith.mulf %318, %302 : vector<8x32xf32>
    %322 = arith.mulf %317, %320 : vector<8x32xf32>
    %323 = arith.addf %321, %322 : vector<8x32xf32>
    %324 = math.tanh %323 : vector<8x32xf32>
    %325 = arith.mulf %319, %324 : vector<8x32xf32>
    %c5_i32_110 = arith.constant 5 : i32
    %326 = arith.index_cast %c5_i32_110 : i32 to index
    %c0_111 = arith.constant 0 : index
    %c0_112 = arith.constant 0 : index
    %327 = vector.load %arg13[%326, %c0_111, %c0_112] : memref<8x8x128xf32, #tpu.memory_space<vmem>>, vector<1x8x128xf32>
    %328 = vector.shape_cast %327 : vector<1x8x128xf32> to vector<8x128xf32>
    %329 = arith.truncf %325 : vector<8x32xf32> to vector<8x32xbf16>
    %cst_113 = arith.constant dense<0.000000e+00> : vector<8x128xf32>
    %330 = tpu.matmul %329, %220, %cst_113 {dimension_numbers = #tpu.dot_dimension_numbers<[1], [0], [0], [1], [0, 0, 1, 1], [], []>} : vector<8x32xbf16>, vector<32x128xbf16>, vector<8x128xf32> -> vector<8x128xf32>
    %331 = arith.addf %328, %330 : vector<8x128xf32>
    %332 = math.tanh %331 : vector<8x128xf32>
    %333 = vector.extract_strided_slice %332 {offsets = [0, 0], sizes = [8, 96], strides = [1, 1]} : vector<8x128xf32> to vector<8x96xf32>
    %cst_114 = arith.constant 5.000000e-01 : f32
    %334 = vector.broadcast %cst_114 : f32 to vector<8x96xf32>
    %335 = arith.mulf %334, %333 : vector<8x96xf32>
    %cst_115 = arith.constant 5.000000e-01 : f32
    %336 = vector.broadcast %cst_115 : f32 to vector<8x96xf32>
    %337 = arith.addf %335, %336 : vector<8x96xf32>
    %338 = vector.extract_strided_slice %337 {offsets = [0, 0], sizes = [8, 32], strides = [1, 1]} : vector<8x96xf32> to vector<8x32xf32>
    %339 = vector.extract_strided_slice %337 {offsets = [0, 32], sizes = [8, 32], strides = [1, 1]} : vector<8x96xf32> to vector<8x32xf32>
    %340 = vector.extract_strided_slice %337 {offsets = [0, 64], sizes = [8, 32], strides = [1, 1]} : vector<8x96xf32> to vector<8x32xf32>
    %341 = vector.extract_strided_slice %332 {offsets = [0, 96], sizes = [8, 32], strides = [1, 1]} : vector<8x128xf32> to vector<8x32xf32>
    %342 = arith.mulf %339, %323 : vector<8x32xf32>
    %343 = arith.mulf %338, %341 : vector<8x32xf32>
    %344 = arith.addf %342, %343 : vector<8x32xf32>
    %345 = math.tanh %344 : vector<8x32xf32>
    %346 = arith.mulf %340, %345 : vector<8x32xf32>
    %c6_i32_116 = arith.constant 6 : i32
    %347 = arith.index_cast %c6_i32_116 : i32 to index
    %c0_117 = arith.constant 0 : index
    %c0_118 = arith.constant 0 : index
    %348 = vector.load %arg13[%347, %c0_117, %c0_118] : memref<8x8x128xf32, #tpu.memory_space<vmem>>, vector<1x8x128xf32>
    %349 = vector.shape_cast %348 : vector<1x8x128xf32> to vector<8x128xf32>
    %350 = arith.truncf %346 : vector<8x32xf32> to vector<8x32xbf16>
    %cst_119 = arith.constant dense<0.000000e+00> : vector<8x128xf32>
    %351 = tpu.matmul %350, %220, %cst_119 {dimension_numbers = #tpu.dot_dimension_numbers<[1], [0], [0], [1], [0, 0, 1, 1], [], []>} : vector<8x32xbf16>, vector<32x128xbf16>, vector<8x128xf32> -> vector<8x128xf32>
    %352 = arith.addf %349, %351 : vector<8x128xf32>
    %353 = math.tanh %352 : vector<8x128xf32>
    %354 = vector.extract_strided_slice %353 {offsets = [0, 0], sizes = [8, 96], strides = [1, 1]} : vector<8x128xf32> to vector<8x96xf32>
    %cst_120 = arith.constant 5.000000e-01 : f32
    %355 = vector.broadcast %cst_120 : f32 to vector<8x96xf32>
    %356 = arith.mulf %355, %354 : vector<8x96xf32>
    %cst_121 = arith.constant 5.000000e-01 : f32
    %357 = vector.broadcast %cst_121 : f32 to vector<8x96xf32>
    %358 = arith.addf %356, %357 : vector<8x96xf32>
    %359 = vector.extract_strided_slice %358 {offsets = [0, 0], sizes = [8, 32], strides = [1, 1]} : vector<8x96xf32> to vector<8x32xf32>
    %360 = vector.extract_strided_slice %358 {offsets = [0, 32], sizes = [8, 32], strides = [1, 1]} : vector<8x96xf32> to vector<8x32xf32>
    %361 = vector.extract_strided_slice %358 {offsets = [0, 64], sizes = [8, 32], strides = [1, 1]} : vector<8x96xf32> to vector<8x32xf32>
    %362 = vector.extract_strided_slice %353 {offsets = [0, 96], sizes = [8, 32], strides = [1, 1]} : vector<8x128xf32> to vector<8x32xf32>
    %363 = arith.mulf %360, %344 : vector<8x32xf32>
    %364 = arith.mulf %359, %362 : vector<8x32xf32>
    %365 = arith.addf %363, %364 : vector<8x32xf32>
    %366 = math.tanh %365 : vector<8x32xf32>
    %367 = arith.mulf %361, %366 : vector<8x32xf32>
    %c7_i32_122 = arith.constant 7 : i32
    %368 = arith.index_cast %c7_i32_122 : i32 to index
    %c0_123 = arith.constant 0 : index
    %c0_124 = arith.constant 0 : index
    %369 = vector.load %arg13[%368, %c0_123, %c0_124] : memref<8x8x128xf32, #tpu.memory_space<vmem>>, vector<1x8x128xf32>
    %370 = vector.shape_cast %369 : vector<1x8x128xf32> to vector<8x128xf32>
    %371 = arith.truncf %367 : vector<8x32xf32> to vector<8x32xbf16>
    %cst_125 = arith.constant dense<0.000000e+00> : vector<8x128xf32>
    %372 = tpu.matmul %371, %220, %cst_125 {dimension_numbers = #tpu.dot_dimension_numbers<[1], [0], [0], [1], [0, 0, 1, 1], [], []>} : vector<8x32xbf16>, vector<32x128xbf16>, vector<8x128xf32> -> vector<8x128xf32>
    %373 = arith.addf %370, %372 : vector<8x128xf32>
    %374 = math.tanh %373 : vector<8x128xf32>
    %375 = vector.extract_strided_slice %374 {offsets = [0, 0], sizes = [8, 96], strides = [1, 1]} : vector<8x128xf32> to vector<8x96xf32>
    %cst_126 = arith.constant 5.000000e-01 : f32
    %376 = vector.broadcast %cst_126 : f32 to vector<8x96xf32>
    %377 = arith.mulf %376, %375 : vector<8x96xf32>
    %cst_127 = arith.constant 5.000000e-01 : f32
    %378 = vector.broadcast %cst_127 : f32 to vector<8x96xf32>
    %379 = arith.addf %377, %378 : vector<8x96xf32>
    %380 = vector.extract_strided_slice %379 {offsets = [0, 0], sizes = [8, 32], strides = [1, 1]} : vector<8x96xf32> to vector<8x32xf32>
    %381 = vector.extract_strided_slice %379 {offsets = [0, 32], sizes = [8, 32], strides = [1, 1]} : vector<8x96xf32> to vector<8x32xf32>
    %382 = vector.extract_strided_slice %379 {offsets = [0, 64], sizes = [8, 32], strides = [1, 1]} : vector<8x96xf32> to vector<8x32xf32>
    %383 = vector.extract_strided_slice %374 {offsets = [0, 96], sizes = [8, 32], strides = [1, 1]} : vector<8x128xf32> to vector<8x32xf32>
    %384 = arith.mulf %381, %365 : vector<8x32xf32>
    %385 = arith.mulf %380, %383 : vector<8x32xf32>
    %386 = arith.addf %384, %385 : vector<8x32xf32>
    %387 = math.tanh %386 : vector<8x32xf32>
    %388 = arith.mulf %382, %387 : vector<8x32xf32>
    %c8_i32_128 = arith.constant 8 : i32
    %c0_129 = arith.constant 0 : index
    %c0_130 = arith.constant 0 : index
    %389 = vector.load %arg7[%c0_129, %c0_130] : memref<32x16xf32, #tpu.memory_space<vmem>>, vector<32x16xf32>
    %cst_131 = arith.constant dense<0.000000e+00> : vector<8x16xf32>
    %390 = tpu.matmul %388, %389, %cst_131 {dimension_numbers = #tpu.dot_dimension_numbers<[1], [0], [0], [1], [0, 0, 1, 1], [], []>} : vector<8x32xf32>, vector<32x16xf32>, vector<8x16xf32> -> vector<8x16xf32>
    %c0_132 = arith.constant 0 : index
    %c0_133 = arith.constant 0 : index
    %391 = vector.load %arg8[%c0_132, %c0_133] : memref<1x16xf32, #tpu.memory_space<vmem>>, vector<1x16xf32>
    %392 = vector.broadcast %391 : vector<1x16xf32> to vector<8x16xf32>
    %393 = arith.addf %390, %392 : vector<8x16xf32>
    %cst_134 = arith.constant 0.000000e+00 : f32
    %394 = vector.broadcast %cst_134 : f32 to vector<8x16xf32>
    %395 = arith.cmpf ogt, %393, %394 : vector<8x16xf32>
    %cst_135 = arith.constant 0.00999999977 : f32
    %396 = vector.broadcast %cst_135 : f32 to vector<8x16xf32>
    %397 = arith.mulf %396, %393 : vector<8x16xf32>
    %398 = arith.select %395, %393, %397 : vector<8x16xi1>, vector<8x16xf32>
    %c0_136 = arith.constant 0 : index
    %c0_137 = arith.constant 0 : index
    %399 = vector.load %arg9[%c0_136, %c0_137] : memref<1x16xf32, #tpu.memory_space<vmem>>, vector<1x16xf32>
    %400 = vector.broadcast %399 : vector<1x16xf32> to vector<8x16xf32>
    %401 = arith.mulf %398, %400 : vector<8x16xf32>
    %cst_138 = arith.constant dense<0.000000e+00> : vector<8xf32>
    %402 = vector.multi_reduction <add>, %401, %cst_138 [1] : vector<8x16xf32> to vector<8xf32>
    %403 = vector.shape_cast %402 : vector<8xf32> to vector<8x1xf32>
    %c0_139 = arith.constant 0 : index
    %c0_140 = arith.constant 0 : index
    %404 = vector.load %arg10[%c0_139, %c0_140] : memref<1x1xf32, #tpu.memory_space<vmem>>, vector<1x1xf32>
    %405 = vector.broadcast %404 : vector<1x1xf32> to vector<8x1xf32>
    %406 = arith.addf %403, %405 : vector<8x1xf32>
    %407 = vector.shape_cast %406 : vector<8x1xf32> to vector<8x1xf32>
    %408 = vector.broadcast %407 : vector<8x1xf32> to vector<8x128xf32>
    %c0_141 = arith.constant 0 : index
    %c0_142 = arith.constant 0 : index
    %409 = vector.load %arg11[%c0_141, %c0_142] : memref<8x128xf32, #tpu.memory_space<vmem>>, vector<8x128xf32>
    tpu.vector_store %arg11[%c0_141, %c0_142], %408 {strides = array<i32>} : memref<8x128xf32, #tpu.memory_space<vmem>>, vector<8x128xf32>,
    return
  }
}

</mosaic_0001>

<llo_original>
// kernel: sohlstm_forward.1
$region0: #{sohlstm_forward.1}
  #allocation0 [shape = 'u32[]', space=smem, size = 0x4, offset = 0x4, fixed_abs, tag = 'smem constant byte address 0x4 - core index']
  #allocation1 [shape = 'u32[72,128]{1,0:T(1,128)}', space=vmem, size = 0x9000, scoped, tag = 'internal scratch']
  #allocation2 [shape = 'f32[8,8,32]{2,1,0:T(8,128)}', space=vmem, size = 0x8000, scoped, tag = 'scratch operand']
  #allocation3 [shape = 'f32[8,8,128]{2,1,0:T(8,128)}', space=vmem, size = 0x8000, scoped, tag = 'scratch operand']
  #allocation4 [shape = 'f32[1,1]{1,0:T(1,128)S(1)}', space=vmem, size = 0x200, scoped, tag = 'scoped memory for sohlstm_forward.1']
  %s0 = inlined_call_operand.vmem [shape: bf16[64,3], index: 0, kind: input, shape index: {}]
  %s1 = inlined_call_operand.vmem [shape: bf16[3,128], index: 1, kind: input, shape index: {}]
  %s2 = inlined_call_operand.vmem [shape: bf16[32,128], index: 2, kind: input, shape index: {}]
  %s3 = inlined_call_operand.vmem [shape: f32[1,128], index: 3, kind: input, shape index: {}]
  %s4 = inlined_call_operand.vmem [shape: bf16[32,128], index: 4, kind: input, shape index: {}]
  %s5 = inlined_call_operand.vmem [shape: bf16[32,128], index: 5, kind: input, shape index: {}]
  %s6 = inlined_call_operand.vmem [shape: f32[1,128], index: 6, kind: input, shape index: {}]
  %s7 = inlined_call_operand.vmem [shape: f32[32,16], index: 7, kind: input, shape index: {}]
  %s8 = inlined_call_operand.vmem [shape: f32[1,16], index: 8, kind: input, shape index: {}]
  %s9 = inlined_call_operand.vmem [shape: f32[1,16], index: 9, kind: input, shape index: {}]
  %s10 = inlined_call_operand.<no memory space> [shape: f32[1,1], index: 10, kind: input, shape index: {}]
  %s11 = inlined_call_operand.vmem [shape: f32[8,128], index: 11, kind: output, shape index: {}]
  %s12 = sld [smem:[#allocation0]]
  $region54: #{sohlstm_forward.1} parent=0
    _
  %s14 = ssub.s32 1, %s12
  %s15 = scalar_select 0, %s14, %s12
  %v16 = vstv %s10
  %17 = vst [vmem:[#allocation4] sm:$0x1] %v16
  // Predicated region
  $region2: #{sohlstm_forward.1} parent=0 // pred_check
    _
  $region3: #{sohlstm_forward.1} parent=0 // pred_check_branch
    %19 = sbr.rel (0) target = $region5
  $region4: #{sohlstm_forward.1} parent=0 // pred_region
    _
  $region5: #{sohlstm_forward.1} parent=0 // pred_fallthru
    _
  // Predicated region
  $region6: #{sohlstm_forward.1} parent=0 // pred_check
    _
  $region7: #{sohlstm_forward.1} parent=0 // pred_check_branch
    %21 = sbr.rel (0) target = $region9
  $region8: #{sohlstm_forward.1} parent=0 // pred_region
    _
  $region9: #{sohlstm_forward.1} parent=0 // pred_fallthru
    _
  // Predicated region
  $region10: #{sohlstm_forward.1} parent=0 // pred_check
    _
  $region11: #{sohlstm_forward.1} parent=0 // pred_check_branch
    %23 = sbr.rel (0) target = $region13
  $region12: #{sohlstm_forward.1} parent=0 // pred_region
    _
  $region13: #{sohlstm_forward.1} parent=0 // pred_fallthru
    _
  // Predicated region
  $region14: #{sohlstm_forward.1} parent=0 // pred_check
    _
  $region15: #{sohlstm_forward.1} parent=0 // pred_check_branch
    %25 = sbr.rel (0) target = $region17
  $region16: #{sohlstm_forward.1} parent=0 // pred_region
    _
  $region17: #{sohlstm_forward.1} parent=0 // pred_fallthru
    _
  // Predicated region
  $region18: #{sohlstm_forward.1} parent=0 // pred_check
    _
  $region19: #{sohlstm_forward.1} parent=0 // pred_check_branch
    %27 = sbr.rel (0) target = $region21
  $region20: #{sohlstm_forward.1} parent=0 // pred_region
    _
  $region21: #{sohlstm_forward.1} parent=0 // pred_fallthru
    _
  // Predicated region
  $region22: #{sohlstm_forward.1} parent=0 // pred_check
    _
  $region23: #{sohlstm_forward.1} parent=0 // pred_check_branch
    %29 = sbr.rel (0) target = $region25
  $region24: #{sohlstm_forward.1} parent=0 // pred_region
    _
  $region25: #{sohlstm_forward.1} parent=0 // pred_fallthru
    _
  // Predicated region
  $region26: #{sohlstm_forward.1} parent=0 // pred_check
    _
  $region27: #{sohlstm_forward.1} parent=0 // pred_check_branch
    %31 = sbr.rel (0) target = $region29
  $region28: #{sohlstm_forward.1} parent=0 // pred_region
    _
  $region29: #{sohlstm_forward.1} parent=0 // pred_fallthru
    _
  // Predicated region
  $region30: #{sohlstm_forward.1} parent=0 // pred_check
    _
  $region31: #{sohlstm_forward.1} parent=0 // pred_check_branch
    %33 = sbr.rel (0) target = $region33
  $region32: #{sohlstm_forward.1} parent=0 // pred_region
    _
  $region33: #{sohlstm_forward.1} parent=0 // pred_fallthru
    _
  // Predicated region
  $region34: #{sohlstm_forward.1} parent=0 // pred_check
    _
  $region35: #{sohlstm_forward.1} parent=0 // pred_check_branch
    %35 = sbr.rel (0) target = $region37
  $region36: #{sohlstm_forward.1} parent=0 // pred_region
    _
  $region37: #{sohlstm_forward.1} parent=0 // pred_fallthru
    _
  // Predicated region
  $region38: #{sohlstm_forward.1} parent=0 // pred_check
    _
  $region39: #{sohlstm_forward.1} parent=0 // pred_check_branch
    %37 = sbr.rel (0) target = $region41
  $region40: #{sohlstm_forward.1} parent=0 // pred_region
    _
  $region41: #{sohlstm_forward.1} parent=0 // pred_fallthru
    _
  // Predicated region
  $region42: #{sohlstm_forward.1} parent=0 // pred_check
    _
  $region43: #{sohlstm_forward.1} parent=0 // pred_check_branch
    %39 = sbr.rel (0) target = $region45
  $region44: #{sohlstm_forward.1} parent=0 // pred_region
    _
  $region45: #{sohlstm_forward.1} parent=0 // pred_fallthru
    _
  %v41 = vld [vmem:[%s0] sm:$0xf]
  %v42 = vld [vmem:[%s0 + $0x4] sm:$0xf]
  %v43 = vld [vmem:[%s0 + $0x8] sm:$0xf]
  %v44 = vld [vmem:[%s0 + $0xc] sm:$0xf]
  %v45 = vld [vmem:[%s0 + $0x10] sm:$0xf]
  %v46 = vld [vmem:[%s0 + $0x14] sm:$0xf]
  %v47 = vld [vmem:[%s0 + $0x18] sm:$0xf]
  %v48 = vld [vmem:[%s0 + $0x1c] sm:$0xf]
  %v49 = vld [vmem:[%s1] sm:$0x3]
  %v50 = vld [vmem:[%s3] sm:$0x1]
  %v52 = vperm.slane %v50, 0
  %v62 = vunpack.c.l.b16 %v41
  %v63 = vunpack.c.l.b16 %v42
  %v64 = vunpack.c.l.b16 %v43
  %v65 = vunpack.c.l.b16 %v44
  %v66 = vunpack.c.l.b16 %v45
  %v67 = vunpack.c.l.b16 %v46
  %v68 = vunpack.c.l.b16 %v47
  %v69 = vunpack.c.l.b16 %v48
  %v70 = vpack.c.b16 %v63, %v62
  %v71 = vpack.c.b16 %v65, %v64
  %v72 = vpack.c.b16 %v67, %v66
  %v73 = vpack.c.b16 %v69, %v68
  %vm74 = vcmask 23552
  %v76 = vsel %vm74, %v70, 0
  %v79 = vsel %vm74, %v71, 0
  %v82 = vsel %vm74, %v72, 0
  %v85 = vsel %vm74, %v73, 0
  %vm87 = vcmask 1040384
  %vm88 = vcmask 1041408
  %v89 = vsel %vm87, 4294967295, 65535
  %v90 = vsel %vm88, %v89, 0
  %v92 = vand.u32 %v49, %v90
  %94 = vmatpush.bf16.msra.mxu0 0
  %95 = vmatpush.bf16.msra.mxu0 0
  %96 = vmatpush.bf16.msra.mxu0 0
  %97 = vmatpush.bf16.msra.mxu0 0
  %98 = vmatpush.bf16.msra.mxu0 0
  %99 = vmatpush.bf16.msra.mxu0 0
  %100 = vmatpush.bf16.msra.mxu0 0
  %101 = vmatpush.bf16.msra.mxu0 %v92
  %102 = vmatmul.bf16.gmra.mxu0 %v76
  %v103 = vpop.f32.mrf.mxu0
  %v104 = vadd.f32 %v52, %v103
  %v105 = vpop.f32.mrf.mxu0
  %v106 = vadd.f32 %v52, %v105
  %107 = vmatmul.bf16.gmra.mxu0 %v79
  %v108 = vpop.f32.mrf.mxu0
  %v109 = vadd.f32 %v52, %v108
  %v110 = vpop.f32.mrf.mxu0
  %v111 = vadd.f32 %v52, %v110
  %112 = vmatmul.bf16.gmra.mxu0 %v82
  %v113 = vpop.f32.mrf.mxu0
  %v114 = vadd.f32 %v52, %v113
  %v115 = vpop.f32.mrf.mxu0
  %v116 = vadd.f32 %v52, %v115
  %117 = vmatmul.bf16.gmra.mxu0 %v85
  %v118 = vpop.f32.mrf.mxu0
  %v119 = vadd.f32 %v52, %v118
  %v120 = vpop.f32.mrf.mxu0
  %v121 = vadd.f32 %v52, %v120
  %122 = vdwg.mxu0
  %123 = vst [vmem:[#allocation3] sm:$0xff] %v104
  %124 = vst [vmem:[#allocation3 + $0x8] sm:$0xff] %v106
  %125 = vst [vmem:[#allocation3 + $0x10] sm:$0xff] %v109
  %126 = vst [vmem:[#allocation3 + $0x18] sm:$0xff] %v111
  %127 = vst [vmem:[#allocation3 + $0x20] sm:$0xff] %v114
  %128 = vst [vmem:[#allocation3 + $0x28] sm:$0xff] %v116
  %129 = vst [vmem:[#allocation3 + $0x30] sm:$0xff] %v119
  %130 = vst [vmem:[#allocation3 + $0x38] sm:$0xff] %v121
  %v131 = vld [vmem:[%s2] sm:$0xf]
  %v132 = vld [vmem:[%s2 + $0x4] sm:$0xf]
  %v133 = vld [vmem:[%s2 + $0x8] sm:$0xf]
  %v134 = vld [vmem:[%s2 + $0xc] sm:$0xf]
  %v135 = vld [vmem:[#allocation3] sm:$0xff]
  %v140 = vunpack.c.l.b16 %v131
  %v141 = vunpack.c.l.b16 %v132
  %v142 = vunpack.c.l.b16 %v133
  %v143 = vunpack.c.l.b16 %v134
  %v144 = vpack.c.b16 %v141, %v140
  %v145 = vpack.c.b16 %v143, %v142
  %vm148 = vcmask 261120
  %v150 = vsel %vm148, 0, 0
  %152 = vmatpush.bf16.msra.mxu0 0
  %153 = vmatpush.bf16.msra.mxu0 0
  %154 = vmatpush.bf16.msra.mxu0 0
  %155 = vmatpush.bf16.msra.mxu0 0
  %156 = vmatpush.bf16.msra.mxu0 0
  %157 = vmatpush.bf16.msra.mxu0 0
  %158 = vmatpush.bf16.msra.mxu0 %v145
  %159 = vmatpush.bf16.msra.mxu0 %v144
  %160 = vmatmul.bf16.gmra.mxu0 %v150
  %v161 = vpop.f32.mrf.mxu0
  %v162 = vadd.f32 0.0, %v161
  %v163 = vpop.f32.mrf.mxu0
  %164 = vdwg.mxu0
  %v165 = vadd.f32 %v135, %v162
  %v166 = vtanh.pop %v165
  %v167 = vmul.f32 %v166, 0.5
  %v168 = vadd.f32 %v167, 0.5
  %v169 = vmul.f32 %v168, 0.0
  %171 = vrot.lane.b32.xlu0 %v166, 32
  %v172 = vpop.permute.xlu0 %171
  %v174 = vmul.f32 %v168, %v172
  %176 = vrot.lane.b32.xlu0 %v174, 32
  %v177 = vpop.permute.xlu0 %176
  %v179 = vadd.f32 %v169, %v177
  %v180 = vtanh.pop %v179
  %182 = vrot.lane.b32.xlu0 %v180, 32
  %v183 = vpop.permute.xlu0 %182
  %v185 = vmul.f32 %v168, %v183
  %187 = vrot.lane.b32.xlu0 %v185, 64
  %v188 = vpop.permute.xlu0 %187
  %190 = vst.msk [vmem:[#allocation2] sm:$0xff] %vm148, %v188
  %s191 = scalar_lea.vmem [#allocation3], 8
  %v192 = vld [vmem:[%s191] sm:$0xff]
  %v193 = vpack.c.bf16 %v185, %v185
  %195 = vrot.lane.b32.xlu0 %v193, 64
  %v196 = vpop.permute.xlu0 %195
  %v198 = vsel %vm148, %v196, 0
  %200 = vmatpush.bf16.msra.mxu0 0
  %201 = vmatpush.bf16.msra.mxu0 0
  %202 = vmatpush.bf16.msra.mxu0 0
  %203 = vmatpush.bf16.msra.mxu0 0
  %204 = vmatpush.bf16.msra.mxu0 0
  %205 = vmatpush.bf16.msra.mxu0 0
  %206 = vmatpush.bf16.msra.mxu0 %v145
  %207 = vmatpush.bf16.msra.mxu0 %v144
  %208 = vmatmul.bf16.gmra.mxu0 %v198
  %v209 = vpop.f32.mrf.mxu0
  %v210 = vadd.f32 0.0, %v209
  %v211 = vpop.f32.mrf.mxu0
  %212 = vdwg.mxu0
  %v213 = vadd.f32 %v192, %v210
  %v214 = vtanh.pop %v213
  %v215 = vmul.f32 %v214, 0.5
  %v216 = vadd.f32 %v215, 0.5
  %v217 = vmul.f32 %v216, %v179
  %219 = vrot.lane.b32.xlu0 %v214, 32
  %v220 = vpop.permute.xlu0 %219
  %v222 = vmul.f32 %v216, %v220
  %224 = vrot.lane.b32.xlu0 %v222, 32
  %v225 = vpop.permute.xlu0 %224
  %v227 = vadd.f32 %v217, %v225
  %v228 = vtanh.pop %v227
  %230 = vrot.lane.b32.xlu0 %v228, 32
  %v231 = vpop.permute.xlu0 %230
  %v233 = vmul.f32 %v216, %v231
  %235 = vrot.lane.b32.xlu0 %v233, 64
  %v236 = vpop.permute.xlu0 %235
  %s238 = scalar_lea.vmem [#allocation2], 8
  %239 = vst.msk [vmem:[%s238] sm:$0xff] %vm148, %v236
  %s240 = scalar_lea.vmem [#allocation3], 16
  %v241 = vld [vmem:[%s240] sm:$0xff]
  %v242 = vpack.c.bf16 %v233, %v233
  %244 = vrot.lane.b32.xlu0 %v242, 64
  %v245 = vpop.permute.xlu0 %244
  %v247 = vsel %vm148, %v245, 0
  %249 = vmatpush.bf16.msra.mxu0 0
  %250 = vmatpush.bf16.msra.mxu0 0
  %251 = vmatpush.bf16.msra.mxu0 0
  %252 = vmatpush.bf16.msra.mxu0 0
  %253 = vmatpush.bf16.msra.mxu0 0
  %254 = vmatpush.bf16.msra.mxu0 0
  %255 = vmatpush.bf16.msra.mxu0 %v145
  %256 = vmatpush.bf16.msra.mxu0 %v144
  %257 = vmatmul.bf16.gmra.mxu0 %v247
  %v258 = vpop.f32.mrf.mxu0
  %v259 = vadd.f32 0.0, %v258
  %v260 = vpop.f32.mrf.mxu0
  %261 = vdwg.mxu0
  %v262 = vadd.f32 %v241, %v259
  %v263 = vtanh.pop %v262
  %v264 = vmul.f32 %v263, 0.5
  %v265 = vadd.f32 %v264, 0.5
  %v266 = vmul.f32 %v265, %v227
  %268 = vrot.lane.b32.xlu0 %v263, 32
  %v269 = vpop.permute.xlu0 %268
  %v271 = vmul.f32 %v265, %v269
  %273 = vrot.lane.b32.xlu0 %v271, 32
  %v274 = vpop.permute.xlu0 %273
  %v276 = vadd.f32 %v266, %v274
  %v277 = vtanh.pop %v276
  %279 = vrot.lane.b32.xlu0 %v277, 32
  %v280 = vpop.permute.xlu0 %279
  %v282 = vmul.f32 %v265, %v280
  %284 = vrot.lane.b32.xlu0 %v282, 64
  %v285 = vpop.permute.xlu0 %284
  %s287 = scalar_lea.vmem [#allocation2], 16
  %288 = vst.msk [vmem:[%s287] sm:$0xff] %vm148, %v285
  %s289 = scalar_lea.vmem [#allocation3], 24
  %v290 = vld [vmem:[%s289] sm:$0xff]
  %v291 = vpack.c.bf16 %v282, %v282
  %293 = vrot.lane.b32.xlu0 %v291, 64
  %v294 = vpop.permute.xlu0 %293
  %v296 = vsel %vm148, %v294, 0
  %298 = vmatpush.bf16.msra.mxu0 0
  %299 = vmatpush.bf16.msra.mxu0 0
  %300 = vmatpush.bf16.msra.mxu0 0
  %301 = vmatpush.bf16.msra.mxu0 0
  %302 = vmatpush.bf16.msra.mxu0 0
  %303 = vmatpush.bf16.msra.mxu0 0
  %304 = vmatpush.bf16.msra.mxu0 %v145
  %305 = vmatpush.bf16.msra.mxu0 %v144
  %306 = vmatmul.bf16.gmra.mxu0 %v296
  %v307 = vpop.f32.mrf.mxu0
  %v308 = vadd.f32 0.0, %v307
  %v309 = vpop.f32.mrf.mxu0
  %310 = vdwg.mxu0
  %v311 = vadd.f32 %v290, %v308
  %v312 = vtanh.pop %v311
  %v313 = vmul.f32 %v312, 0.5
  %v314 = vadd.f32 %v313, 0.5
  %v315 = vmul.f32 %v314, %v276
  %317 = vrot.lane.b32.xlu0 %v312, 32
  %v318 = vpop.permute.xlu0 %317
  %v320 = vmul.f32 %v314, %v318
  %322 = vrot.lane.b32.xlu0 %v320, 32
  %v323 = vpop.permute.xlu0 %322
  %v325 = vadd.f32 %v315, %v323
  %v326 = vtanh.pop %v325
  %328 = vrot.lane.b32.xlu0 %v326, 32
  %v329 = vpop.permute.xlu0 %328
  %v331 = vmul.f32 %v314, %v329
  %333 = vrot.lane.b32.xlu0 %v331, 64
  %v334 = vpop.permute.xlu0 %333
  %s336 = scalar_lea.vmem [#allocation2], 24
  %337 = vst.msk [vmem:[%s336] sm:$0xff] %vm148, %v334
  %s338 = scalar_lea.vmem [#allocation3], 32
  %v339 = vld [vmem:[%s338] sm:$0xff]
  %v340 = vpack.c.bf16 %v331, %v331
  %342 = vrot.lane.b32.xlu0 %v340, 64
  %v343 = vpop.permute.xlu0 %342
  %v345 = vsel %vm148, %v343, 0
  %347 = vmatpush.bf16.msra.mxu0 0
  %348 = vmatpush.bf16.msra.mxu0 0
  %349 = vmatpush.bf16.msra.mxu0 0
  %350 = vmatpush.bf16.msra.mxu0 0
  %351 = vmatpush.bf16.msra.mxu0 0
  %352 = vmatpush.bf16.msra.mxu0 0
  %353 = vmatpush.bf16.msra.mxu0 %v145
  %354 = vmatpush.bf16.msra.mxu0 %v144
  %355 = vmatmul.bf16.gmra.mxu0 %v345
  %v356 = vpop.f32.mrf.mxu0
  %v357 = vadd.f32 0.0, %v356
  %v358 = vpop.f32.mrf.mxu0
  %359 = vdwg.mxu0
  %v360 = vadd.f32 %v339, %v357
  %v361 = vtanh.pop %v360
  %v362 = vmul.f32 %v361, 0.5
  %v363 = vadd.f32 %v362, 0.5
  %v364 = vmul.f32 %v363, %v325
  %366 = vrot.lane.b32.xlu0 %v361, 32
  %v367 = vpop.permute.xlu0 %366
  %v369 = vmul.f32 %v363, %v367
  %371 = vrot.lane.b32.xlu0 %v369, 32
  %v372 = vpop.permute.xlu0 %371
  %v374 = vadd.f32 %v364, %v372
  %v375 = vtanh.pop %v374
  %377 = vrot.lane.b32.xlu0 %v375, 32
  %v378 = vpop.permute.xlu0 %377
  %v380 = vmul.f32 %v363, %v378
  %382 = vrot.lane.b32.xlu0 %v380, 64
  %v383 = vpop.permute.xlu0 %382
  %s385 = scalar_lea.vmem [#allocation2], 32
  %386 = vst.msk [vmem:[%s385] sm:$0xff] %vm148, %v383
  %s387 = scalar_lea.vmem [#allocation3], 40
  %v388 = vld [vmem:[%s387] sm:$0xff]
  %v389 = vpack.c.bf16 %v380, %v380
  %391 = vrot.lane.b32.xlu0 %v389, 64
  %v392 = vpop.permute.xlu0 %391
  %v394 = vsel %vm148, %v392, 0
  %396 = vmatpush.bf16.msra.mxu0 0
  %397 = vmatpush.bf16.msra.mxu0 0
  %398 = vmatpush.bf16.msra.mxu0 0
  %399 = vmatpush.bf16.msra.mxu0 0
  %400 = vmatpush.bf16.msra.mxu0 0
  %401 = vmatpush.bf16.msra.mxu0 0
  %402 = vmatpush.bf16.msra.mxu0 %v145
  %403 = vmatpush.bf16.msra.mxu0 %v144
  %404 = vmatmul.bf16.gmra.mxu0 %v394
  %v405 = vpop.f32.mrf.mxu0
  %v406 = vadd.f32 0.0, %v405
  %v407 = vpop.f32.mrf.mxu0
  %408 = vdwg.mxu0
  %v409 = vadd.f32 %v388, %v406
  %v410 = vtanh.pop %v409
  %v411 = vmul.f32 %v410, 0.5
  %v412 = vadd.f32 %v411, 0.5
  %v413 = vmul.f32 %v412, %v374
  %415 = vrot.lane.b32.xlu0 %v410, 32
  %v416 = vpop.permute.xlu0 %415
  %v418 = vmul.f32 %v412, %v416
  %420 = vrot.lane.b32.xlu0 %v418, 32
  %v421 = vpop.permute.xlu0 %420
  %v423 = vadd.f32 %v413, %v421
  %v424 = vtanh.pop %v423
  %426 = vrot.lane.b32.xlu0 %v424, 32
  %v427 = vpop.permute.xlu0 %426
  %v429 = vmul.f32 %v412, %v427
  %431 = vrot.lane.b32.xlu0 %v429, 64
  %v432 = vpop.permute.xlu0 %431
  %s434 = scalar_lea.vmem [#allocation2], 40
  %435 = vst.msk [vmem:[%s434] sm:$0xff] %vm148, %v432
  %s436 = scalar_lea.vmem [#allocation3], 48
  %v437 = vld [vmem:[%s436] sm:$0xff]
  %v438 = vpack.c.bf16 %v429, %v429
  %440 = vrot.lane.b32.xlu0 %v438, 64
  %v441 = vpop.permute.xlu0 %440
  %v443 = vsel %vm148, %v441, 0
  %445 = vmatpush.bf16.msra.mxu0 0
  %446 = vmatpush.bf16.msra.mxu0 0
  %447 = vmatpush.bf16.msra.mxu0 0
  %448 = vmatpush.bf16.msra.mxu0 0
  %449 = vmatpush.bf16.msra.mxu0 0
  %450 = vmatpush.bf16.msra.mxu0 0
  %451 = vmatpush.bf16.msra.mxu0 %v145
  %452 = vmatpush.bf16.msra.mxu0 %v144
  %453 = vmatmul.bf16.gmra.mxu0 %v443
  %v454 = vpop.f32.mrf.mxu0
  %v455 = vadd.f32 0.0, %v454
  %v456 = vpop.f32.mrf.mxu0
  %457 = vdwg.mxu0
  %v458 = vadd.f32 %v437, %v455
  %v459 = vtanh.pop %v458
  %v460 = vmul.f32 %v459, 0.5
  %v461 = vadd.f32 %v460, 0.5
  %v462 = vmul.f32 %v461, %v423
  %464 = vrot.lane.b32.xlu0 %v459, 32
  %v465 = vpop.permute.xlu0 %464
  %v467 = vmul.f32 %v461, %v465
  %469 = vrot.lane.b32.xlu0 %v467, 32
  %v470 = vpop.permute.xlu0 %469
  %v472 = vadd.f32 %v462, %v470
  %v473 = vtanh.pop %v472
  %475 = vrot.lane.b32.xlu0 %v473, 32
  %v476 = vpop.permute.xlu0 %475
  %v478 = vmul.f32 %v461, %v476
  %480 = vrot.lane.b32.xlu0 %v478, 64
  %v481 = vpop.permute.xlu0 %480
  %s483 = scalar_lea.vmem [#allocation2], 48
  %484 = vst.msk [vmem:[%s483] sm:$0xff] %vm148, %v481
  %s485 = scalar_lea.vmem [#allocation3], 56
  %v486 = vld [vmem:[%s485] sm:$0xff]
  %v487 = vpack.c.bf16 %v478, %v478
  %489 = vrot.lane.b32.xlu0 %v487, 64
  %v490 = vpop.permute.xlu0 %489
  %v492 = vsel %vm148, %v490, 0
  %494 = vmatpush.bf16.msra.mxu0 0
  %495 = vmatpush.bf16.msra.mxu0 0
  %496 = vmatpush.bf16.msra.mxu0 0
  %497 = vmatpush.bf16.msra.mxu0 0
  %498 = vmatpush.bf16.msra.mxu0 0
  %499 = vmatpush.bf16.msra.mxu0 0
  %500 = vmatpush.bf16.msra.mxu0 %v145
  %501 = vmatpush.bf16.msra.mxu0 %v144
  %502 = vmatmul.bf16.gmra.mxu0 %v492
  %v503 = vpop.f32.mrf.mxu0
  %v504 = vadd.f32 0.0, %v503
  %v505 = vpop.f32.mrf.mxu0
  %506 = vdwg.mxu0
  %v507 = vadd.f32 %v486, %v504
  %v508 = vtanh.pop %v507
  %v509 = vmul.f32 %v508, 0.5
  %v510 = vadd.f32 %v509, 0.5
  %v511 = vmul.f32 %v510, %v472
  %513 = vrot.lane.b32.xlu0 %v508, 32
  %v514 = vpop.permute.xlu0 %513
  %v516 = vmul.f32 %v510, %v514
  %518 = vrot.lane.b32.xlu0 %v516, 32
  %v519 = vpop.permute.xlu0 %518
  %v521 = vadd.f32 %v511, %v519
  %v522 = vtanh.pop %v521
  %524 = vrot.lane.b32.xlu0 %v522, 32
  %v525 = vpop.permute.xlu0 %524
  %v527 = vmul.f32 %v510, %v525
  %529 = vrot.lane.b32.xlu0 %v527, 64
  %v530 = vpop.permute.xlu0 %529
  %s532 = scalar_lea.vmem [#allocation2], 56
  %533 = vst.msk [vmem:[%s532] sm:$0xff] %vm148, %v530
  %v534 = vld [vmem:[#allocation2] sm:$0xff]
  %v535 = vld [vmem:[#allocation2 + $0x8] sm:$0xff]
  %v536 = vld [vmem:[#allocation2 + $0x10] sm:$0xff]
  %v537 = vld [vmem:[#allocation2 + $0x18] sm:$0xff]
  %v538 = vld [vmem:[#allocation2 + $0x20] sm:$0xff]
  %v539 = vld [vmem:[#allocation2 + $0x28] sm:$0xff]
  %v540 = vld [vmem:[#allocation2 + $0x30] sm:$0xff]
  %v541 = vld [vmem:[#allocation2 + $0x38] sm:$0xff]
  %v542 = vpack.c.bf16 %v535, %v534
  %v543 = vpack.c.bf16 %v537, %v536
  %v544 = vpack.c.bf16 %v539, %v538
  %v545 = vpack.c.bf16 %v541, %v540
  %v546 = vld [vmem:[%s4] sm:$0xf]
  %v547 = vld [vmem:[%s4 + $0x4] sm:$0xf]
  %v548 = vld [vmem:[%s4 + $0x8] sm:$0xf]
  %v549 = vld [vmem:[%s4 + $0xc] sm:$0xf]
  %v550 = vld [vmem:[%s6] sm:$0x1]
  %v552 = vperm.slane %v550, 0
  %v558 = vunpack.c.l.b16 %v546
  %v559 = vunpack.c.l.b16 %v547
  %v560 = vunpack.c.l.b16 %v548
  %v561 = vunpack.c.l.b16 %v549
  %v562 = vpack.c.b16 %v559, %v558
  %v563 = vpack.c.b16 %v561, %v560
  %v567 = vsel %vm148, %v542, 0
  %v570 = vsel %vm148, %v543, 0
  %v573 = vsel %vm148, %v544, 0
  %v576 = vsel %vm148, %v545, 0
  %578 = vmatpush.bf16.msra.mxu0 0
  %579 = vmatpush.bf16.msra.mxu0 0
  %580 = vmatpush.bf16.msra.mxu0 0
  %581 = vmatpush.bf16.msra.mxu0 0
  %582 = vmatpush.bf16.msra.mxu0 0
  %583 = vmatpush.bf16.msra.mxu0 0
  %584 = vmatpush.bf16.msra.mxu0 %v563
  %585 = vmatpush.bf16.msra.mxu0 %v562
  %586 = vmatmul.bf16.gmra.mxu0 %v567
  %v587 = vpop.f32.mrf.mxu0
  %v588 = vadd.f32 %v552, %v587
  %v589 = vpop.f32.mrf.mxu0
  %v590 = vadd.f32 %v552, %v589
  %591 = vmatmul.bf16.gmra.mxu0 %v570
  %v592 = vpop.f32.mrf.mxu0
  %v593 = vadd.f32 %v552, %v592
  %v594 = vpop.f32.mrf.mxu0
  %v595 = vadd.f32 %v552, %v594
  %596 = vmatmul.bf16.gmra.mxu0 %v573
  %v597 = vpop.f32.mrf.mxu0
  %v598 = vadd.f32 %v552, %v597
  %v599 = vpop.f32.mrf.mxu0
  %v600 = vadd.f32 %v552, %v599
  %601 = vmatmul.bf16.gmra.mxu0 %v576
  %v602 = vpop.f32.mrf.mxu0
  %v603 = vadd.f32 %v552, %v602
  %v604 = vpop.f32.mrf.mxu0
  %v605 = vadd.f32 %v552, %v604
  %606 = vdwg.mxu0
  %607 = vst [vmem:[#allocation3] sm:$0xff] %v588
  %608 = vst [vmem:[#allocation3 + $0x8] sm:$0xff] %v590
  %609 = vst [vmem:[#allocation3 + $0x10] sm:$0xff] %v593
  %610 = vst [vmem:[#allocation3 + $0x18] sm:$0xff] %v595
  %611 = vst [vmem:[#allocation3 + $0x20] sm:$0xff] %v598
  %612 = vst [vmem:[#allocation3 + $0x28] sm:$0xff] %v600
  %613 = vst [vmem:[#allocation3 + $0x30] sm:$0xff] %v603
  %614 = vst [vmem:[#allocation3 + $0x38] sm:$0xff] %v605
  %v615 = vld [vmem:[%s5] sm:$0xf]
  %v616 = vld [vmem:[%s5 + $0x4] sm:$0xf]
  %v617 = vld [vmem:[%s5 + $0x8] sm:$0xf]
  %v618 = vld [vmem:[%s5 + $0xc] sm:$0xf]
  %v619 = vld [vmem:[#allocation3] sm:$0xff]
  %v624 = vunpack.c.l.b16 %v615
  %v625 = vunpack.c.l.b16 %v616
  %v626 = vunpack.c.l.b16 %v617
  %v627 = vunpack.c.l.b16 %v618
  %v628 = vpack.c.b16 %v625, %v624
  %v629 = vpack.c.b16 %v627, %v626
  %632 = vmatpush.bf16.msra.mxu0 0
  %633 = vmatpush.bf16.msra.mxu0 0
  %634 = vmatpush.bf16.msra.mxu0 0
  %635 = vmatpush.bf16.msra.mxu0 0
  %636 = vmatpush.bf16.msra.mxu0 0
  %637 = vmatpush.bf16.msra.mxu0 0
  %638 = vmatpush.bf16.msra.mxu0 %v629
  %639 = vmatpush.bf16.msra.mxu0 %v628
  %640 = vmatmul.bf16.gmra.mxu0 %v150
  %v641 = vpop.f32.mrf.mxu0
  %v642 = vadd.f32 0.0, %v641
  %v643 = vpop.f32.mrf.mxu0
  %644 = vdwg.mxu0
  %v645 = vadd.f32 %v619, %v642
  %v646 = vtanh.pop %v645
  %v647 = vmul.f32 %v646, 0.5
  %v648 = vadd.f32 %v647, 0.5
  %v649 = vmul.f32 %v648, 0.0
  %651 = vrot.lane.b32.xlu0 %v646, 32
  %v652 = vpop.permute.xlu0 %651
  %v654 = vmul.f32 %v648, %v652
  %656 = vrot.lane.b32.xlu0 %v654, 32
  %v657 = vpop.permute.xlu0 %656
  %v659 = vadd.f32 %v649, %v657
  %v660 = vtanh.pop %v659
  %662 = vrot.lane.b32.xlu0 %v660, 32
  %v663 = vpop.permute.xlu0 %662
  %v665 = vmul.f32 %v648, %v663
  %v666 = vld [vmem:[%s191] sm:$0xff]
  %v667 = vpack.c.bf16 %v665, %v665
  %669 = vrot.lane.b32.xlu0 %v667, 64
  %v670 = vpop.permute.xlu0 %669
  %v672 = vsel %vm148, %v670, 0
  %674 = vmatpush.bf16.msra.mxu0 0
  %675 = vmatpush.bf16.msra.mxu0 0
  %676 = vmatpush.bf16.msra.mxu0 0
  %677 = vmatpush.bf16.msra.mxu0 0
  %678 = vmatpush.bf16.msra.mxu0 0
  %679 = vmatpush.bf16.msra.mxu0 0
  %680 = vmatpush.bf16.msra.mxu0 %v629
  %681 = vmatpush.bf16.msra.mxu0 %v628
  %682 = vmatmul.bf16.gmra.mxu0 %v672
  %v683 = vpop.f32.mrf.mxu0
  %v684 = vadd.f32 0.0, %v683
  %v685 = vpop.f32.mrf.mxu0
  %686 = vdwg.mxu0
  %v687 = vadd.f32 %v666, %v684
  %v688 = vtanh.pop %v687
  %v689 = vmul.f32 %v688, 0.5
  %v690 = vadd.f32 %v689, 0.5
  %v691 = vmul.f32 %v690, %v659
  %693 = vrot.lane.b32.xlu0 %v688, 32
  %v694 = vpop.permute.xlu0 %693
  %v696 = vmul.f32 %v690, %v694
  %698 = vrot.lane.b32.xlu0 %v696, 32
  %v699 = vpop.permute.xlu0 %698
  %v701 = vadd.f32 %v691, %v699
  %v702 = vtanh.pop %v701
  %704 = vrot.lane.b32.xlu0 %v702, 32
  %v705 = vpop.permute.xlu0 %704
  %v707 = vmul.f32 %v690, %v705
  %v708 = vld [vmem:[%s240] sm:$0xff]
  %v709 = vpack.c.bf16 %v707, %v707
  %711 = vrot.lane.b32.xlu0 %v709, 64
  %v712 = vpop.permute.xlu0 %711
  %v714 = vsel %vm148, %v712, 0
  %716 = vmatpush.bf16.msra.mxu0 0
  %717 = vmatpush.bf16.msra.mxu0 0
  %718 = vmatpush.bf16.msra.mxu0 0
  %719 = vmatpush.bf16.msra.mxu0 0
  %720 = vmatpush.bf16.msra.mxu0 0
  %721 = vmatpush.bf16.msra.mxu0 0
  %722 = vmatpush.bf16.msra.mxu0 %v629
  %723 = vmatpush.bf16.msra.mxu0 %v628
  %724 = vmatmul.bf16.gmra.mxu0 %v714
  %v725 = vpop.f32.mrf.mxu0
  %v726 = vadd.f32 0.0, %v725
  %v727 = vpop.f32.mrf.mxu0
  %728 = vdwg.mxu0
  %v729 = vadd.f32 %v708, %v726
  %v730 = vtanh.pop %v729
  %v731 = vmul.f32 %v730, 0.5
  %v732 = vadd.f32 %v731, 0.5
  %v733 = vmul.f32 %v732, %v701
  %735 = vrot.lane.b32.xlu0 %v730, 32
  %v736 = vpop.permute.xlu0 %735
  %v738 = vmul.f32 %v732, %v736
  %740 = vrot.lane.b32.xlu0 %v738, 32
  %v741 = vpop.permute.xlu0 %740
  %v743 = vadd.f32 %v733, %v741
  %v744 = vtanh.pop %v743
  %746 = vrot.lane.b32.xlu0 %v744, 32
  %v747 = vpop.permute.xlu0 %746
  %v749 = vmul.f32 %v732, %v747
  %v750 = vld [vmem:[%s289] sm:$0xff]
  %v751 = vpack.c.bf16 %v749, %v749
  %753 = vrot.lane.b32.xlu0 %v751, 64
  %v754 = vpop.permute.xlu0 %753
  %v756 = vsel %vm148, %v754, 0
  %758 = vmatpush.bf16.msra.mxu0 0
  %759 = vmatpush.bf16.msra.mxu0 0
  %760 = vmatpush.bf16.msra.mxu0 0
  %761 = vmatpush.bf16.msra.mxu0 0
  %762 = vmatpush.bf16.msra.mxu0 0
  %763 = vmatpush.bf16.msra.mxu0 0
  %764 = vmatpush.bf16.msra.mxu0 %v629
  %765 = vmatpush.bf16.msra.mxu0 %v628
  %766 = vmatmul.bf16.gmra.mxu0 %v756
  %v767 = vpop.f32.mrf.mxu0
  %v768 = vadd.f32 0.0, %v767
  %v769 = vpop.f32.mrf.mxu0
  %770 = vdwg.mxu0
  %v771 = vadd.f32 %v750, %v768
  %v772 = vtanh.pop %v771
  %v773 = vmul.f32 %v772, 0.5
  %v774 = vadd.f32 %v773, 0.5
  %v775 = vmul.f32 %v774, %v743
  %777 = vrot.lane.b32.xlu0 %v772, 32
  %v778 = vpop.permute.xlu0 %777
  %v780 = vmul.f32 %v774, %v778
  %782 = vrot.lane.b32.xlu0 %v780, 32
  %v783 = vpop.permute.xlu0 %782
  %v785 = vadd.f32 %v775, %v783
  %v786 = vtanh.pop %v785
  %788 = vrot.lane.b32.xlu0 %v786, 32
  %v789 = vpop.permute.xlu0 %788
  %v791 = vmul.f32 %v774, %v789
  %v792 = vld [vmem:[%s338] sm:$0xff]
  %v793 = vpack.c.bf16 %v791, %v791
  %795 = vrot.lane.b32.xlu0 %v793, 64
  %v796 = vpop.permute.xlu0 %795
  %v798 = vsel %vm148, %v796, 0
  %800 = vmatpush.bf16.msra.mxu0 0
  %801 = vmatpush.bf16.msra.mxu0 0
  %802 = vmatpush.bf16.msra.mxu0 0
  %803 = vmatpush.bf16.msra.mxu0 0
  %804 = vmatpush.bf16.msra.mxu0 0
  %805 = vmatpush.bf16.msra.mxu0 0
  %806 = vmatpush.bf16.msra.mxu0 %v629
  %807 = vmatpush.bf16.msra.mxu0 %v628
  %808 = vmatmul.bf16.gmra.mxu0 %v798
  %v809 = vpop.f32.mrf.mxu0
  %v810 = vadd.f32 0.0, %v809
  %v811 = vpop.f32.mrf.mxu0
  %812 = vdwg.mxu0
  %v813 = vadd.f32 %v792, %v810
  %v814 = vtanh.pop %v813
  %v815 = vmul.f32 %v814, 0.5
  %v816 = vadd.f32 %v815, 0.5
  %v817 = vmul.f32 %v816, %v785
  %819 = vrot.lane.b32.xlu0 %v814, 32
  %v820 = vpop.permute.xlu0 %819
  %v822 = vmul.f32 %v816, %v820
  %824 = vrot.lane.b32.xlu0 %v822, 32
  %v825 = vpop.permute.xlu0 %824
  %v827 = vadd.f32 %v817, %v825
  %v828 = vtanh.pop %v827
  %830 = vrot.lane.b32.xlu0 %v828, 32
  %v831 = vpop.permute.xlu0 %830
  %v833 = vmul.f32 %v816, %v831
  %v834 = vld [vmem:[%s387] sm:$0xff]
  %v835 = vpack.c.bf16 %v833, %v833
  %837 = vrot.lane.b32.xlu0 %v835, 64
  %v838 = vpop.permute.xlu0 %837
  %v840 = vsel %vm148, %v838, 0
  %842 = vmatpush.bf16.msra.mxu0 0
  %843 = vmatpush.bf16.msra.mxu0 0
  %844 = vmatpush.bf16.msra.mxu0 0
  %845 = vmatpush.bf16.msra.mxu0 0
  %846 = vmatpush.bf16.msra.mxu0 0
  %847 = vmatpush.bf16.msra.mxu0 0
  %848 = vmatpush.bf16.msra.mxu0 %v629
  %849 = vmatpush.bf16.msra.mxu0 %v628
  %850 = vmatmul.bf16.gmra.mxu0 %v840
  %v851 = vpop.f32.mrf.mxu0
  %v852 = vadd.f32 0.0, %v851
  %v853 = vpop.f32.mrf.mxu0
  %854 = vdwg.mxu0
  %v855 = vadd.f32 %v834, %v852
  %v856 = vtanh.pop %v855
  %v857 = vmul.f32 %v856, 0.5
  %v858 = vadd.f32 %v857, 0.5
  %v859 = vmul.f32 %v858, %v827
  %861 = vrot.lane.b32.xlu0 %v856, 32
  %v862 = vpop.permute.xlu0 %861
  %v864 = vmul.f32 %v858, %v862
  %866 = vrot.lane.b32.xlu0 %v864, 32
  %v867 = vpop.permute.xlu0 %866
  %v869 = vadd.f32 %v859, %v867
  %v870 = vtanh.pop %v869
  %872 = vrot.lane.b32.xlu0 %v870, 32
  %v873 = vpop.permute.xlu0 %872
  %v875 = vmul.f32 %v858, %v873
  %v876 = vld [vmem:[%s436] sm:$0xff]
  %v877 = vpack.c.bf16 %v875, %v875
  %879 = vrot.lane.b32.xlu0 %v877, 64
  %v880 = vpop.permute.xlu0 %879
  %v882 = vsel %vm148, %v880, 0
  %884 = vmatpush.bf16.msra.mxu0 0
  %885 = vmatpush.bf16.msra.mxu0 0
  %886 = vmatpush.bf16.msra.mxu0 0
  %887 = vmatpush.bf16.msra.mxu0 0
  %888 = vmatpush.bf16.msra.mxu0 0
  %889 = vmatpush.bf16.msra.mxu0 0
  %890 = vmatpush.bf16.msra.mxu0 %v629
  %891 = vmatpush.bf16.msra.mxu0 %v628
  %892 = vmatmul.bf16.gmra.mxu0 %v882
  %v893 = vpop.f32.mrf.mxu0
  %v894 = vadd.f32 0.0, %v893
  %v895 = vpop.f32.mrf.mxu0
  %896 = vdwg.mxu0
  %v897 = vadd.f32 %v876, %v894
  %v898 = vtanh.pop %v897
  %v899 = vmul.f32 %v898, 0.5
  %v900 = vadd.f32 %v899, 0.5
  %v901 = vmul.f32 %v900, %v869
  %903 = vrot.lane.b32.xlu0 %v898, 32
  %v904 = vpop.permute.xlu0 %903
  %v906 = vmul.f32 %v900, %v904
  %908 = vrot.lane.b32.xlu0 %v906, 32
  %v909 = vpop.permute.xlu0 %908
  %v911 = vadd.f32 %v901, %v909
  %v912 = vtanh.pop %v911
  %914 = vrot.lane.b32.xlu0 %v912, 32
  %v915 = vpop.permute.xlu0 %914
  %v917 = vmul.f32 %v900, %v915
  %v918 = vld [vmem:[%s485] sm:$0xff]
  %v919 = vpack.c.bf16 %v917, %v917
  %921 = vrot.lane.b32.xlu0 %v919, 64
  %v922 = vpop.permute.xlu0 %921
  %v924 = vsel %vm148, %v922, 0
  %926 = vmatpush.bf16.msra.mxu0 0
  %927 = vmatpush.bf16.msra.mxu0 0
  %928 = vmatpush.bf16.msra.mxu0 0
  %929 = vmatpush.bf16.msra.mxu0 0
  %930 = vmatpush.bf16.msra.mxu0 0
  %931 = vmatpush.bf16.msra.mxu0 0
  %932 = vmatpush.bf16.msra.mxu0 %v629
  %933 = vmatpush.bf16.msra.mxu0 %v628
  %934 = vmatmul.bf16.gmra.mxu0 %v924
  %v935 = vpop.f32.mrf.mxu0
  %v936 = vadd.f32 0.0, %v935
  %v937 = vpop.f32.mrf.mxu0
  %938 = vdwg.mxu0
  %v939 = vadd.f32 %v918, %v936
  %v940 = vtanh.pop %v939
  %v941 = vmul.f32 %v940, 0.5
  %v942 = vadd.f32 %v941, 0.5
  %v943 = vmul.f32 %v942, %v911
  %945 = vrot.lane.b32.xlu0 %v940, 32
  %v946 = vpop.permute.xlu0 %945
  %v948 = vmul.f32 %v942, %v946
  %950 = vrot.lane.b32.xlu0 %v948, 32
  %v951 = vpop.permute.xlu0 %950
  %v953 = vadd.f32 %v943, %v951
  %v954 = vtanh.pop %v953
  %956 = vrot.lane.b32.xlu0 %v954, 32
  %v957 = vpop.permute.xlu0 %956
  %v959 = vmul.f32 %v942, %v957
  %v960 = vld [vmem:[%s7] sm:$0xff]
  %v961 = vld [vmem:[%s7 + $0x8] sm:$0xff]
  %v962 = vld [vmem:[%s7 + $0x10] sm:$0xff]
  %v963 = vld [vmem:[%s7 + $0x18] sm:$0xff]
  %v964 = vld [vmem:[%s8] sm:$0x1]
  %v966 = vperm.slane %v964, 0
  %969 = vrot.lane.b32.xlu0 %v959, 64
  %v970 = vpop.permute.xlu0 %969
  %v971 = vsel %vm148, %v970, 0
  %973 = vmatpush.msra.mxu0 0.0
  %974 = vmatpush.msra.mxu0 0.0
  %975 = vmatpush.msra.mxu0 0.0
  %976 = vmatpush.msra.mxu0 0.0
  %977 = vmatpush.msra.mxu0 0.0
  %978 = vmatpush.msra.mxu0 0.0
  %979 = vmatpush.msra.mxu0 0.0
  %980 = vmatpush.msra.mxu0 0.0
  %981 = vmatpush.msra.mxu0 0.0
  %982 = vmatpush.msra.mxu0 0.0
  %983 = vmatpush.msra.mxu0 0.0
  %984 = vmatpush.msra.mxu0 0.0
  %985 = vmatpush.msra.mxu0 %v963
  %986 = vmatpush.msra.mxu0 %v962
  %987 = vmatpush.msra.mxu0 %v961
  %988 = vmatpush.msra.mxu0 %v960
  %989 = vmatmul.f32.gmra.mxu0 %v971
  %v990 = vpop.f32.mrf.mxu0
  %v991 = vadd.f32 %v966, %v990
  %992 = vdwg.mxu0
  %vm993 = vcmp.gt.f32.partialorder %v991, 0.0
  %v994 = vmul.f32 %v991, 0.01
  %v995 = vsel %vm993, %v991, %v994
  %v996 = vld [vmem:[%s9] sm:$0x1]
  %v998 = vperm.slane %v996, 0
  %v1000 = vmul.f32 %v995, %v998
  %vm1001 = vcmask 130048
  %v1002 = vsel %vm1001, %v1000, 0.0
  %1003 = vadd.xlane.f32.xlu0 %v1002
  %v1004 = vpop.xlane.xlu0 %1003
  %v1005 = vld [vmem:[#allocation4] sm:$0x1]
  %v1007 = vperm.slane %v1005, 0
  %v1009 = vadd.f32 %v1004, %v1007
  %1011 = vset.pattern.permute.xlu0 0
  %1012 = vperm.xlu0 %1011, %v1009
  %v1013 = vpop.permute.xlu0 %1012
  %1015 = vst [vmem:[%s11] sm:$0xff] %v1013
  // Predicated region
  $region46: #{sohlstm_forward.1} parent=0 // pred_check
    _
  $region47: #{sohlstm_forward.1} parent=0 // pred_check_branch
    %1017 = sbr.rel (0) target = $region49
  $region48: #{sohlstm_forward.1} parent=0 // pred_region
    _
  $region49: #{sohlstm_forward.1} parent=0 // pred_fallthru
    _
  // Predicated region
  $region50: #{sohlstm_forward.1} parent=0 // pred_check
    _
  $region51: #{sohlstm_forward.1} parent=0 // pred_check_branch
    %1019 = sbr.rel (0) target = $region53
  $region52: #{sohlstm_forward.1} parent=0 // pred_region
    _
  $region53: #{sohlstm_forward.1} parent=0 // pred_fallthru
    _

</llo_original>
